<compile_context>
chip_gen: v5e
topology: v5e:2x2
jax: 0.10.0
libtpu: 0.0.40
codegen_flags: <defaults>
</compile_context>

<pallas_src>
import jax
import jax.numpy as jnp
from jax.experimental import pallas as pl
from jax.experimental.pallas import tpu as pltpu

EPS = 1e-5   # nn.BatchNorm1d default eps
LANE = 128   # TPU lane width; classifier head is padded to a multiple of this


# --------------------------------------------------------------------------- #
# Kernel
# --------------------------------------------------------------------------- #
def enhanced_nn_kernel(x_ref, *refs):
    """Fused MLP forward for one batch tile.

    refs = (w0, b0, w1, b1, ..., w_out, b_out, o_ref)
      - weights: bf16, [in, out], BatchNorm(eval) pre-folded
      - biases:  f32,  [1, out]
    Matmuls are bf16 on the MXU with f32 accumulation; the bias+ReLU epilogue
    stays in f32 (VPU-friendly on v5e, which has no bf16 VALU).
    """
    o_ref = refs[-1]
    params = refs[:-1]
    n_linear = len(params) // 2

    h = x_ref[...].astype(jnp.bfloat16)
    for li in range(n_linear - 1):
        w = params[2 * li]
        b = params[2 * li + 1]
        acc = jnp.dot(h, w[...], preferred_element_type=jnp.float32) + b[...]
        # ReLU; Dropout(0.5) is identity in eval mode.
        h = jnp.maximum(acc, 0.0).astype(jnp.bfloat16)

    w_out, b_out = params[-2], params[-1]
    out = jnp.dot(h, w_out[...], preferred_element_type=jnp.float32) + b_out[...]
    o_ref[...] = out.astype(o_ref.dtype)


# --------------------------------------------------------------------------- #
# One-time host-side parameter preparation (hoisted off the forward path)
# --------------------------------------------------------------------------- #
def _fold_bn_into_linear(p):
    """Fold eval-mode BatchNorm1d into the preceding Linear."""
    scale = p["gamma"] * jax.lax.rsqrt(p["var"] + EPS)          # [1, out]
    w = p["w"] * scale                                          # [in, out]
    b = (p["b"] - p["mean"]) * scale + p["beta"]                # [1, out]
    return w, b


def prepare_params(params, input_size):
    """Fold BN, cast weights to bf16, pad the head to 128 lanes.

    Call ONCE at param-load time; the result is reused by every forward call so
    no O(total-params) prep ops sit on the inference path.
    """
    flat = []
    layer_dims = []
    cur_in = input_size
    for p in params["hidden"]:
        w, b = _fold_bn_into_linear(p)
        flat += [w.astype(jnp.bfloat16), b.astype(jnp.float32)]
        layer_dims.append((cur_in, w.shape[1]))
        cur_in = w.shape[1]

    num_classes = params["out_w"].shape[1]
    out_pad = -(-num_classes // LANE) * LANE                    # ceil to 128
    w_out = jnp.zeros((cur_in, out_pad), jnp.float32)
    w_out = w_out.at[:, :num_classes].set(params["out_w"])
    b_out = jnp.zeros((1, out_pad), jnp.float32)
    b_out = b_out.at[:, :num_classes].set(params["out_b"])
    flat += [w_out.astype(jnp.bfloat16), b_out.astype(jnp.float32)]
    layer_dims.append((cur_in, out_pad))

    flat = tuple(jax.block_until_ready(a) for a in flat)        # materialize now
    return {
        "flat": flat,
        "layer_dims": tuple(layer_dims),
        "in_features": int(input_size),
        "num_classes": int(num_classes),
        "out_pad": int(out_pad),
    }


# --------------------------------------------------------------------------- #
# Tile-size heuristic
# --------------------------------------------------------------------------- #
def _default_tile_b(batch16):
    """batch16: batch rounded up to a multiple of 16 (bf16 sublane pack)."""
    if batch16 <= 256:
        # Small batch (demo case): one grid step -> single ~0.35us step overhead.
        return batch16
    # Large batch: 256-512-row tiles and >=2 grid steps so the "parallel" batch
    # axis can shard across both v7x TensorCores; v5e/v6e just see big tiles.
    half = -(-batch16 // 2)
    half = -(-half // 16) * 16
    return min(512, half)


# --------------------------------------------------------------------------- #
# Forward wrapper
# --------------------------------------------------------------------------- #
def enhanced_nn_forward(x, prepared, *, tile_b=None):
    batch, in_features = x.shape
    assert in_features == prepared["in_features"], (in_features, prepared["in_features"])
    flat = prepared["flat"]
    out_pad = prepared["out_pad"]
    num_classes = prepared["num_classes"]

    # ---- pick batch tile (multiple of 16 for bf16 sublane packing)
    batch16 = -(-batch // 16) * 16
    if tile_b is None:
        tile_b = _default_tile_b(batch16)
    tile_b = max(16, -(-int(tile_b) // 16) * 16)
    grid_b = pl.cdiv(batch, tile_b)
    padded_batch = grid_b * tile_b
    if padded_batch != batch:
        x = jnp.pad(x, ((0, padded_batch - batch), (0, 0)))

    # ---- BlockSpecs: x / out tiled over batch; weights & biases resident
    x_spec = pl.BlockSpec((tile_b, in_features), lambda i: (i, 0))
    out_spec = pl.BlockSpec((tile_b, out_pad), lambda i: (i, 0))

    # ---- VMEM budget: 2x-buffered x/out tiles + resident params (budgeted at 2x
    #      in case the single-buffer request is ignored) + rough activation temps.
    max_width = max(d for _, d in prepared["layer_dims"])
    x_bytes = tile_b * in_features * x.dtype.itemsize
    out_bytes = tile_b * out_pad * 4
    param_bytes = sum(int(a.size) * a.dtype.itemsize for a in flat)
    act_bytes = tile_b * max_width * 4 * 3
    vmem_needed = 2 * x_bytes + 2 * out_bytes + 2 * param_bytes + act_bytes
    vmem_limit = int(min(96 * 2**20, max(16 * 2**20, 2 * vmem_needed)))

    # ---- advisory cost estimate
    flops = 2 * padded_batch * sum(a * b for a, b in prepared["layer_dims"])
    bytes_accessed = (padded_batch * in_features * x.dtype.itemsize
                      + padded_batch * out_pad * 4
                      + param_bytes)
    cost = pl.CostEstimate(flops=flops, transcendentals=0,
                           bytes_accessed=bytes_accessed)

    def call(param_pipeline_mode):
        # Constant index_map -> params stay resident in VMEM across grid steps.
        param_specs = [
            pl.BlockSpec(a.shape, lambda i: (0, 0),
                         pipeline_mode=param_pipeline_mode)
            for a in flat
        ]
        return pl.pallas_call(
            enhanced_nn_kernel,
            out_shape=jax.ShapeDtypeStruct((padded_batch, out_pad), jnp.float32),
            grid_spec=pltpu.PrefetchScalarGridSpec(
                num_scalar_prefetch=0,
                grid=(grid_b,),
                in_specs=[x_spec] + param_specs,
                out_specs=out_spec,
            ),
            compiler_params=pltpu.CompilerParams(
                dimension_semantics=("parallel",),   # megacore sharding on v7x
                vmem_limit_bytes=vmem_limit,
            ),
            cost_estimate=cost,
        )(x, *flat)

    try:
        # Resident params are never re-fetched -> single buffer halves their
        # VMEM footprint (matters most under v7x's 64 MiB VMEM when scaled up).
        out = call(pl.Buffered(1))
    except Exception:
        # Fallback: default double-buffering (identical results, slightly more VMEM).
        out = call(None)

    return out[:batch, :num_classes]


# --------------------------------------------------------------------------- #
# Parameter init (shapes match nn.Linear / nn.BatchNorm1d)
# --------------------------------------------------------------------------- #
def init_params(key, input_size, num_classes, layers):
    params = {"hidden": []}
    in_features = input_size
    for layer_size in layers:
        key, kw, kb, kg, kbt, km, kv = jax.random.split(key, 7)
        scale = 1.0 / jnp.sqrt(jnp.float32(in_features))
        params["hidden"].append({
            # Linear: weight stored [in, out] (transposed vs torch [out, in])
            "w": jax.random.uniform(kw, (in_features, layer_size), jnp.float32,
                                    -scale, scale),
            "b": jax.random.uniform(kb, (1, layer_size), jnp.float32, -scale, scale),
            # BatchNorm1d affine + running stats
            "gamma": 1.0 + 0.05 * jax.random.normal(kg, (1, layer_size), jnp.float32),
            "beta": 0.05 * jax.random.normal(kbt, (1, layer_size), jnp.float32),
            "mean": 0.1 * jax.random.normal(km, (1, layer_size), jnp.float32),
            "var": jnp.abs(1.0 + 0.1 * jax.random.normal(kv, (1, layer_size),
                                                         jnp.float32)),
        })
        in_features = layer_size
    key, kw, kb = jax.random.split(key, 3)
    scale = 1.0 / jnp.sqrt(jnp.float32(in_features))
    params["out_w"] = jax.random.uniform(kw, (in_features, num_classes), jnp.float32,
                                         -scale, scale)
    params["out_b"] = jax.random.uniform(kb, (1, num_classes), jnp.float32,
                                         -scale, scale)
    return params


# --------------------------------------------------------------------------- #
# Pure-JAX f32 reference (eval-mode semantics)
# --------------------------------------------------------------------------- #
def reference_forward(x, params):
    h = x.astype(jnp.float32)
    for p in params["hidden"]:
        h = h @ p["w"] + p["b"]
        h = (h - p["mean"]) * jax.lax.rsqrt(p["var"] + EPS) * p["gamma"] + p["beta"]
        h = jnp.maximum(h, 0.0)
    return h @ params["out_w"] + params["out_b"]


if __name__ == "__main__":
    # Small shapes consistent with the module's (batch, input_size) MLP interface.
    BATCH = 64
    INPUT_SIZE = 128
    NUM_CLASSES = 10
    LAYERS = [256, 128, 128]   # scaled-down version of default [512, 256, 128]

    key = jax.random.PRNGKey(0)
    key, kx = jax.random.split(key)
    x = jax.random.normal(kx, (BATCH, INPUT_SIZE), jnp.float32)
    params = init_params(key, INPUT_SIZE, NUM_CLASSES, LAYERS)

    # One-time prep (BN fold + bf16 cast + head padding) -- NOT on the call path.
    prepared = prepare_params(params, INPUT_SIZE)

    # Default tile heuristic -> tile_b = 64, grid = 1 for this demo batch.
    out = enhanced_nn_forward(x, prepared)
    out = jax.block_until_ready(out)

    ref = jax.block_until_ready(reference_forward(x, params))
    assert out.shape == (BATCH, NUM_CLASSES), out.shape
    # bf16 matmuls with f32 accumulation -> slightly loosened tolerance vs f32 ref
    assert jnp.allclose(out, ref, atol=5e-2, rtol=5e-2), (
        "mismatch vs JAX reference: max abs err = "
        f"{float(jnp.max(jnp.abs(out - ref)))}")

    print("KERNEL_OK")
</pallas_src>

<mosaic_0001>
module attributes {stable_mosaic.version = 11 : i64} {
  func.func @enhanced_nn_kernel(%arg0: i32, %arg1: memref<64x128xf32, #tpu.memory_space<vmem>>, %arg2: memref<128x256xbf16, #tpu.memory_space<vmem>>, %arg3: memref<1x256xf32, #tpu.memory_space<vmem>>, %arg4: memref<256x128xbf16, #tpu.memory_space<vmem>>, %arg5: memref<1x128xf32, #tpu.memory_space<vmem>>, %arg6: memref<128x128xbf16, #tpu.memory_space<vmem>>, %arg7: memref<1x128xf32, #tpu.memory_space<vmem>>, %arg8: memref<128x128xbf16, #tpu.memory_space<vmem>>, %arg9: memref<1x128xf32, #tpu.memory_space<vmem>>, %arg10: memref<64x128xf32, #tpu.memory_space<vmem>>) attributes {dimension_semantics = [#tpu.dimension_semantics<parallel>], iteration_bounds = array<i64: 1>, scalar_prefetch = 0 : i64, scratch_operands = 0 : i64, tpu.core_type = #tpu.core_type<tc>, window_params = [{transform_indices = @transform_0, window_bounds = array<i64: 64, 128>}, {pipeline_mode = #tpu.pipeline_mode<synchronous>, transform_indices = @transform_1, window_bounds = array<i64: 128, 256>}, {pipeline_mode = #tpu.pipeline_mode<synchronous>, transform_indices = @transform_2, window_bounds = array<i64: 1, 256>}, {pipeline_mode = #tpu.pipeline_mode<synchronous>, transform_indices = @transform_3, window_bounds = array<i64: 256, 128>}, {pipeline_mode = #tpu.pipeline_mode<synchronous>, transform_indices = @transform_4, window_bounds = array<i64: 1, 128>}, {pipeline_mode = #tpu.pipeline_mode<synchronous>, transform_indices = @transform_5, window_bounds = array<i64: 128, 128>}, {pipeline_mode = #tpu.pipeline_mode<synchronous>, transform_indices = @transform_6, window_bounds = array<i64: 1, 128>}, {pipeline_mode = #tpu.pipeline_mode<synchronous>, transform_indices = @transform_7, window_bounds = array<i64: 128, 128>}, {pipeline_mode = #tpu.pipeline_mode<synchronous>, transform_indices = @transform_8, window_bounds = array<i64: 1, 128>}, {transform_indices = @transform_9, window_bounds = array<i64: 64, 128>}]} {
    %c0 = arith.constant 0 : index
    %c0_0 = arith.constant 0 : index
    %0 = vector.load %arg1[%c0, %c0_0] : memref<64x128xf32, #tpu.memory_space<vmem>>, vector<64x128xf32>
    %1 = arith.truncf %0 : vector<64x128xf32> to vector<64x128xbf16>
    %c0_1 = arith.constant 0 : index
    %c0_2 = arith.constant 0 : index
    %2 = vector.load %arg2[%c0_1, %c0_2] : memref<128x256xbf16, #tpu.memory_space<vmem>>, vector<128x256xbf16>
    %cst = arith.constant dense<0.000000e+00> : vector<64x256xf32>
    %3 = tpu.matmul %1, %2, %cst {dimension_numbers = #tpu.dot_dimension_numbers<[1], [0], [0], [1], [0, 0, 1, 1], [], []>} : vector<64x128xbf16>, vector<128x256xbf16>, vector<64x256xf32> -> vector<64x256xf32>
    %c0_3 = arith.constant 0 : index
    %c0_4 = arith.constant 0 : index
    %4 = vector.load %arg3[%c0_3, %c0_4] : memref<1x256xf32, #tpu.memory_space<vmem>>, vector<1x256xf32>
    %5 = vector.broadcast %4 : vector<1x256xf32> to vector<64x256xf32>
    %6 = arith.addf %3, %5 : vector<64x256xf32>
    %cst_5 = arith.constant 0.000000e+00 : f32
    %7 = vector.broadcast %cst_5 : f32 to vector<64x256xf32>
    %8 = arith.maximumf %6, %7 : vector<64x256xf32>
    %9 = arith.truncf %8 : vector<64x256xf32> to vector<64x256xbf16>
    %c0_6 = arith.constant 0 : index
    %c0_7 = arith.constant 0 : index
    %10 = vector.load %arg4[%c0_6, %c0_7] : memref<256x128xbf16, #tpu.memory_space<vmem>>, vector<256x128xbf16>
    %cst_8 = arith.constant dense<0.000000e+00> : vector<64x128xf32>
    %11 = tpu.matmul %9, %10, %cst_8 {dimension_numbers = #tpu.dot_dimension_numbers<[1], [0], [0], [1], [0, 0, 1, 1], [], []>} : vector<64x256xbf16>, vector<256x128xbf16>, vector<64x128xf32> -> vector<64x128xf32>
    %c0_9 = arith.constant 0 : index
    %c0_10 = arith.constant 0 : index
    %12 = vector.load %arg5[%c0_9, %c0_10] : memref<1x128xf32, #tpu.memory_space<vmem>>, vector<1x128xf32>
    %13 = vector.broadcast %12 : vector<1x128xf32> to vector<64x128xf32>
    %14 = arith.addf %11, %13 : vector<64x128xf32>
    %cst_11 = arith.constant 0.000000e+00 : f32
    %15 = vector.broadcast %cst_11 : f32 to vector<64x128xf32>
    %16 = arith.maximumf %14, %15 : vector<64x128xf32>
    %17 = arith.truncf %16 : vector<64x128xf32> to vector<64x128xbf16>
    %c0_12 = arith.constant 0 : index
    %c0_13 = arith.constant 0 : index
    %18 = vector.load %arg6[%c0_12, %c0_13] : memref<128x128xbf16, #tpu.memory_space<vmem>>, vector<128x128xbf16>
    %cst_14 = arith.constant dense<0.000000e+00> : vector<64x128xf32>
    %19 = tpu.matmul %17, %18, %cst_14 {dimension_numbers = #tpu.dot_dimension_numbers<[1], [0], [0], [1], [0, 0, 1, 1], [], []>} : vector<64x128xbf16>, vector<128x128xbf16>, vector<64x128xf32> -> vector<64x128xf32>
    %c0_15 = arith.constant 0 : index
    %c0_16 = arith.constant 0 : index
    %20 = vector.load %arg7[%c0_15, %c0_16] : memref<1x128xf32, #tpu.memory_space<vmem>>, vector<1x128xf32>
    %21 = vector.broadcast %20 : vector<1x128xf32> to vector<64x128xf32>
    %22 = arith.addf %19, %21 : vector<64x128xf32>
    %cst_17 = arith.constant 0.000000e+00 : f32
    %23 = vector.broadcast %cst_17 : f32 to vector<64x128xf32>
    %24 = arith.maximumf %22, %23 : vector<64x128xf32>
    %25 = arith.truncf %24 : vector<64x128xf32> to vector<64x128xbf16>
    %c0_18 = arith.constant 0 : index
    %c0_19 = arith.constant 0 : index
    %26 = vector.load %arg8[%c0_18, %c0_19] : memref<128x128xbf16, #tpu.memory_space<vmem>>, vector<128x128xbf16>
    %cst_20 = arith.constant dense<0.000000e+00> : vector<64x128xf32>
    %27 = tpu.matmul %25, %26, %cst_20 {dimension_numbers = #tpu.dot_dimension_numbers<[1], [0], [0], [1], [0, 0, 1, 1], [], []>} : vector<64x128xbf16>, vector<128x128xbf16>, vector<64x128xf32> -> vector<64x128xf32>
    %c0_21 = arith.constant 0 : index
    %c0_22 = arith.constant 0 : index
    %28 = vector.load %arg9[%c0_21, %c0_22] : memref<1x128xf32, #tpu.memory_space<vmem>>, vector<1x128xf32>
    %29 = vector.broadcast %28 : vector<1x128xf32> to vector<64x128xf32>
    %30 = arith.addf %27, %29 : vector<64x128xf32>
    %c0_23 = arith.constant 0 : index
    %c0_24 = arith.constant 0 : index
    %31 = vector.load %arg10[%c0_23, %c0_24] : memref<64x128xf32, #tpu.memory_space<vmem>>, vector<64x128xf32>
    tpu.vector_store %arg10[%c0_23, %c0_24], %30 {strides = array<i32>} : memref<64x128xf32, #tpu.memory_space<vmem>>, vector<64x128xf32>,
    return
  }
  func.func @transform_0(%arg0: i32) -> (i32, i32) {
    %c0_i32 = arith.constant 0 : i32
    %c0_i32_0 = arith.constant 0 : i32
    return %arg0, %c0_i32 : i32, i32
  }
  func.func @transform_1(%arg0: i32) -> (i32, i32) {
    %c0_i32 = arith.constant 0 : i32
    %c0_i32_0 = arith.constant 0 : i32
    %c0_i32_1 = arith.constant 0 : i32
    return %c0_i32, %c0_i32_0 : i32, i32
  }
  func.func @transform_2(%arg0: i32) -> (i32, i32) {
    %c0_i32 = arith.constant 0 : i32
    %c0_i32_0 = arith.constant 0 : i32
    %c0_i32_1 = arith.constant 0 : i32
    return %c0_i32, %c0_i32_0 : i32, i32
  }
  func.func @transform_3(%arg0: i32) -> (i32, i32) {
    %c0_i32 = arith.constant 0 : i32
    %c0_i32_0 = arith.constant 0 : i32
    %c0_i32_1 = arith.constant 0 : i32
    return %c0_i32, %c0_i32_0 : i32, i32
  }
  func.func @transform_4(%arg0: i32) -> (i32, i32) {
    %c0_i32 = arith.constant 0 : i32
    %c0_i32_0 = arith.constant 0 : i32
    %c0_i32_1 = arith.constant 0 : i32
    return %c0_i32, %c0_i32_0 : i32, i32
  }
  func.func @transform_5(%arg0: i32) -> (i32, i32) {
    %c0_i32 = arith.constant 0 : i32
    %c0_i32_0 = arith.constant 0 : i32
    %c0_i32_1 = arith.constant 0 : i32
    return %c0_i32, %c0_i32_0 : i32, i32
  }
  func.func @transform_6(%arg0: i32) -> (i32, i32) {
    %c0_i32 = arith.constant 0 : i32
    %c0_i32_0 = arith.constant 0 : i32
    %c0_i32_1 = arith.constant 0 : i32
    return %c0_i32, %c0_i32_0 : i32, i32
  }
  func.func @transform_7(%arg0: i32) -> (i32, i32) {
    %c0_i32 = arith.constant 0 : i32
    %c0_i32_0 = arith.constant 0 : i32
    %c0_i32_1 = arith.constant 0 : i32
    return %c0_i32, %c0_i32_0 : i32, i32
  }
  func.func @transform_8(%arg0: i32) -> (i32, i32) {
    %c0_i32 = arith.constant 0 : i32
    %c0_i32_0 = arith.constant 0 : i32
    %c0_i32_1 = arith.constant 0 : i32
    return %c0_i32, %c0_i32_0 : i32, i32
  }
  func.func @transform_9(%arg0: i32) -> (i32, i32) {
    %c0_i32 = arith.constant 0 : i32
    %c0_i32_0 = arith.constant 0 : i32
    return %arg0, %c0_i32 : i32, i32
  }
}

module attributes {stable_mosaic.version = 11 : i64} {
  func.func @enhanced_nn_kernel(%arg0: i32, %arg1: memref<64x128xf32, #tpu.memory_space<vmem>>, %arg2: memref<128x256xbf16, #tpu.memory_space<vmem>>, %arg3: memref<1x256xf32, #tpu.memory_space<vmem>>, %arg4: memref<256x128xbf16, #tpu.memory_space<vmem>>, %arg5: memref<1x128xf32, #tpu.memory_space<vmem>>, %arg6: memref<128x128xbf16, #tpu.memory_space<vmem>>, %arg7: memref<1x128xf32, #tpu.memory_space<vmem>>, %arg8: memref<128x128xbf16, #tpu.memory_space<vmem>>, %arg9: memref<1x128xf32, #tpu.memory_space<vmem>>, %arg10: memref<64x128xf32, #tpu.memory_space<vmem>>) attributes {dimension_semantics = [#tpu.dimension_semantics<parallel>], iteration_bounds = array<i64: 1>, scalar_prefetch = 0 : i64, scratch_operands = 0 : i64, tpu.core_type = #tpu.core_type<tc>, window_params = [{transform_indices = @transform_0, window_bounds = array<i64: 64, 128>}, {pipeline_mode = #tpu.pipeline_mode<synchronous>, transform_indices = @transform_1, window_bounds = array<i64: 128, 256>}, {pipeline_mode = #tpu.pipeline_mode<synchronous>, transform_indices = @transform_2, window_bounds = array<i64: 1, 256>}, {pipeline_mode = #tpu.pipeline_mode<synchronous>, transform_indices = @transform_3, window_bounds = array<i64: 256, 128>}, {pipeline_mode = #tpu.pipeline_mode<synchronous>, transform_indices = @transform_4, window_bounds = array<i64: 1, 128>}, {pipeline_mode = #tpu.pipeline_mode<synchronous>, transform_indices = @transform_5, window_bounds = array<i64: 128, 128>}, {pipeline_mode = #tpu.pipeline_mode<synchronous>, transform_indices = @transform_6, window_bounds = array<i64: 1, 128>}, {pipeline_mode = #tpu.pipeline_mode<synchronous>, transform_indices = @transform_7, window_bounds = array<i64: 128, 128>}, {pipeline_mode = #tpu.pipeline_mode<synchronous>, transform_indices = @transform_8, window_bounds = array<i64: 1, 128>}, {transform_indices = @transform_9, window_bounds = array<i64: 64, 128>}]} {
    %c0 = arith.constant 0 : index
    %c0_0 = arith.constant 0 : index
    %0 = vector.load %arg1[%c0, %c0_0] : memref<64x128xf32, #tpu.memory_space<vmem>>, vector<64x128xf32>
    %1 = arith.truncf %0 : vector<64x128xf32> to vector<64x128xbf16>
    %c0_1 = arith.constant 0 : index
    %c0_2 = arith.constant 0 : index
    %2 = vector.load %arg2[%c0_1, %c0_2] : memref<128x256xbf16, #tpu.memory_space<vmem>>, vector<128x256xbf16>
    %cst = arith.constant dense<0.000000e+00> : vector<64x256xf32>
    %3 = tpu.matmul %1, %2, %cst {dimension_numbers = #tpu.dot_dimension_numbers<[1], [0], [0], [1], [0, 0, 1, 1], [], []>} : vector<64x128xbf16>, vector<128x256xbf16>, vector<64x256xf32> -> vector<64x256xf32>
    %c0_3 = arith.constant 0 : index
    %c0_4 = arith.constant 0 : index
    %4 = vector.load %arg3[%c0_3, %c0_4] : memref<1x256xf32, #tpu.memory_space<vmem>>, vector<1x256xf32>
    %5 = vector.broadcast %4 : vector<1x256xf32> to vector<64x256xf32>
    %6 = arith.addf %3, %5 : vector<64x256xf32>
    %cst_5 = arith.constant 0.000000e+00 : f32
    %7 = vector.broadcast %cst_5 : f32 to vector<64x256xf32>
    %8 = arith.maximumf %6, %7 : vector<64x256xf32>
    %9 = arith.truncf %8 : vector<64x256xf32> to vector<64x256xbf16>
    %c0_6 = arith.constant 0 : index
    %c0_7 = arith.constant 0 : index
    %10 = vector.load %arg4[%c0_6, %c0_7] : memref<256x128xbf16, #tpu.memory_space<vmem>>, vector<256x128xbf16>
    %cst_8 = arith.constant dense<0.000000e+00> : vector<64x128xf32>
    %11 = tpu.matmul %9, %10, %cst_8 {dimension_numbers = #tpu.dot_dimension_numbers<[1], [0], [0], [1], [0, 0, 1, 1], [], []>} : vector<64x256xbf16>, vector<256x128xbf16>, vector<64x128xf32> -> vector<64x128xf32>
    %c0_9 = arith.constant 0 : index
    %c0_10 = arith.constant 0 : index
    %12 = vector.load %arg5[%c0_9, %c0_10] : memref<1x128xf32, #tpu.memory_space<vmem>>, vector<1x128xf32>
    %13 = vector.broadcast %12 : vector<1x128xf32> to vector<64x128xf32>
    %14 = arith.addf %11, %13 : vector<64x128xf32>
    %cst_11 = arith.constant 0.000000e+00 : f32
    %15 = vector.broadcast %cst_11 : f32 to vector<64x128xf32>
    %16 = arith.maximumf %14, %15 : vector<64x128xf32>
    %17 = arith.truncf %16 : vector<64x128xf32> to vector<64x128xbf16>
    %c0_12 = arith.constant 0 : index
    %c0_13 = arith.constant 0 : index
    %18 = vector.load %arg6[%c0_12, %c0_13] : memref<128x128xbf16, #tpu.memory_space<vmem>>, vector<128x128xbf16>
    %cst_14 = arith.constant dense<0.000000e+00> : vector<64x128xf32>
    %19 = tpu.matmul %17, %18, %cst_14 {dimension_numbers = #tpu.dot_dimension_numbers<[1], [0], [0], [1], [0, 0, 1, 1], [], []>} : vector<64x128xbf16>, vector<128x128xbf16>, vector<64x128xf32> -> vector<64x128xf32>
    %c0_15 = arith.constant 0 : index
    %c0_16 = arith.constant 0 : index
    %20 = vector.load %arg7[%c0_15, %c0_16] : memref<1x128xf32, #tpu.memory_space<vmem>>, vector<1x128xf32>
    %21 = vector.broadcast %20 : vector<1x128xf32> to vector<64x128xf32>
    %22 = arith.addf %19, %21 : vector<64x128xf32>
    %cst_17 = arith.constant 0.000000e+00 : f32
    %23 = vector.broadcast %cst_17 : f32 to vector<64x128xf32>
    %24 = arith.maximumf %22, %23 : vector<64x128xf32>
    %25 = arith.truncf %24 : vector<64x128xf32> to vector<64x128xbf16>
    %c0_18 = arith.constant 0 : index
    %c0_19 = arith.constant 0 : index
    %26 = vector.load %arg8[%c0_18, %c0_19] : memref<128x128xbf16, #tpu.memory_space<vmem>>, vector<128x128xbf16>
    %cst_20 = arith.constant dense<0.000000e+00> : vector<64x128xf32>
    %27 = tpu.matmul %25, %26, %cst_20 {dimension_numbers = #tpu.dot_dimension_numbers<[1], [0], [0], [1], [0, 0, 1, 1], [], []>} : vector<64x128xbf16>, vector<128x128xbf16>, vector<64x128xf32> -> vector<64x128xf32>
    %c0_21 = arith.constant 0 : index
    %c0_22 = arith.constant 0 : index
    %28 = vector.load %arg9[%c0_21, %c0_22] : memref<1x128xf32, #tpu.memory_space<vmem>>, vector<1x128xf32>
    %29 = vector.broadcast %28 : vector<1x128xf32> to vector<64x128xf32>
    %30 = arith.addf %27, %29 : vector<64x128xf32>
    %c0_23 = arith.constant 0 : index
    %c0_24 = arith.constant 0 : index
    %31 = vector.load %arg10[%c0_23, %c0_24] : memref<64x128xf32, #tpu.memory_space<vmem>>, vector<64x128xf32>
    tpu.vector_store %arg10[%c0_23, %c0_24], %30 {strides = array<i32>} : memref<64x128xf32, #tpu.memory_space<vmem>>, vector<64x128xf32>,
    return
  }
  func.func @transform_0(%arg0: i32) -> (i32, i32) {
    %c0_i32 = arith.constant 0 : i32
    %c0_i32_0 = arith.constant 0 : i32
    return %arg0, %c0_i32 : i32, i32
  }
  func.func @transform_1(%arg0: i32) -> (i32, i32) {
    %c0_i32 = arith.constant 0 : i32
    %c0_i32_0 = arith.constant 0 : i32
    %c0_i32_1 = arith.constant 0 : i32
    return %c0_i32, %c0_i32_0 : i32, i32
  }
  func.func @transform_2(%arg0: i32) -> (i32, i32) {
    %c0_i32 = arith.constant 0 : i32
    %c0_i32_0 = arith.constant 0 : i32
    %c0_i32_1 = arith.constant 0 : i32
    return %c0_i32, %c0_i32_0 : i32, i32
  }
  func.func @transform_3(%arg0: i32) -> (i32, i32) {
    %c0_i32 = arith.constant 0 : i32
    %c0_i32_0 = arith.constant 0 : i32
    %c0_i32_1 = arith.constant 0 : i32
    return %c0_i32, %c0_i32_0 : i32, i32
  }
  func.func @transform_4(%arg0: i32) -> (i32, i32) {
    %c0_i32 = arith.constant 0 : i32
    %c0_i32_0 = arith.constant 0 : i32
    %c0_i32_1 = arith.constant 0 : i32
    return %c0_i32, %c0_i32_0 : i32, i32
  }
  func.func @transform_5(%arg0: i32) -> (i32, i32) {
    %c0_i32 = arith.constant 0 : i32
    %c0_i32_0 = arith.constant 0 : i32
    %c0_i32_1 = arith.constant 0 : i32
    return %c0_i32, %c0_i32_0 : i32, i32
  }
  func.func @transform_6(%arg0: i32) -> (i32, i32) {
    %c0_i32 = arith.constant 0 : i32
    %c0_i32_0 = arith.constant 0 : i32
    %c0_i32_1 = arith.constant 0 : i32
    return %c0_i32, %c0_i32_0 : i32, i32
  }
  func.func @transform_7(%arg0: i32) -> (i32, i32) {
    %c0_i32 = arith.constant 0 : i32
    %c0_i32_0 = arith.constant 0 : i32
    %c0_i32_1 = arith.constant 0 : i32
    return %c0_i32, %c0_i32_0 : i32, i32
  }
  func.func @transform_8(%arg0: i32) -> (i32, i32) {
    %c0_i32 = arith.constant 0 : i32
    %c0_i32_0 = arith.constant 0 : i32
    %c0_i32_1 = arith.constant 0 : i32
    return %c0_i32, %c0_i32_0 : i32, i32
  }
  func.func @transform_9(%arg0: i32) -> (i32, i32) {
    %c0_i32 = arith.constant 0 : i32
    %c0_i32_0 = arith.constant 0 : i32
    return %arg0, %c0_i32 : i32, i32
  }
}

</mosaic_0001>

<llo_original>
// kernel: tpu_custom_call.1
$region0: #{tpu_custom_call.1}
  #allocation0 [shape = 'u32[]', space=smem, size = 0x4, offset = 0x4, fixed_abs, tag = 'smem constant byte address 0x4 - core index']
  #allocation1 [shape = 'u32[72,128]{1,0:T(1,128)}', space=vmem, size = 0x9000, scoped, tag = 'internal scratch']
  %s0 = inlined_call_operand.hbm [shape: f32[64,128], index: 0, kind: input, shape index: {}]
  %s1 = inlined_call_operand.hbm [shape: bf16[128,256], index: 1, kind: input, shape index: {}]
  %s2 = inlined_call_operand.hbm [shape: f32[1,256], index: 2, kind: input, shape index: {}]
  %s3 = inlined_call_operand.hbm [shape: bf16[256,128], index: 3, kind: input, shape index: {}]
  %s4 = inlined_call_operand.vmem [shape: f32[1,128], index: 4, kind: input, shape index: {}]
  %s5 = inlined_call_operand.hbm [shape: bf16[128,128], index: 5, kind: input, shape index: {}]
  %s6 = inlined_call_operand.vmem [shape: f32[1,128], index: 6, kind: input, shape index: {}]
  %s7 = inlined_call_operand.hbm [shape: bf16[128,128], index: 7, kind: input, shape index: {}]
  %s8 = inlined_call_operand.vmem [shape: f32[1,128], index: 8, kind: input, shape index: {}]
  %s9 = inlined_call_operand.hbm [shape: f32[64,128], index: 9, kind: output, shape index: {}]
  %s10 = sld [smem:[#allocation0]]
  $region70: #{tpu_custom_call.1} parent=0
    _
  %s12 = ssub.s32 1, %s10
  %s13 = scalar_select 0, %s12, %s10
  $region1: #{tpu_custom_call.1} parent=0
    #allocation2 [shape = 'u8[32768]{0}', space=vmem, size = 0x8000, scoped, tag = 'input window, operand 0, single buffered']
    #allocation3 [shape = 's32[1]{0}', space=sflag, size = 0x4, scoped, tag = 'scoped memory for tpu_custom_call.1']
    #allocation4 [shape = 's32[1]{0}', space=sflag, size = 0x4, scoped, tag = 'scoped memory for tpu_custom_call.1']
    #allocation5 [shape = 'u8[65536]{0}', space=vmem, size = 0x10000, scoped, tag = 'input window, operand 1, single buffered']
    #allocation6 [shape = 's32[1]{0}', space=sflag, size = 0x4, scoped, tag = 'scoped memory for tpu_custom_call.1']
    #allocation7 [shape = 'u8[1024]{0}', space=vmem, size = 0x400, scoped, tag = 'input window, operand 2, single buffered']
    #allocation8 [shape = 'u8[65536]{0}', space=vmem, size = 0x10000, scoped, tag = 'input window, operand 3, single buffered']
    #allocation9 [shape = 's32[1]{0}', space=sflag, size = 0x4, scoped, tag = 'scoped memory for tpu_custom_call.1']
    #allocation10 [shape = 'u8[32768]{0}', space=vmem, size = 0x8000, scoped, tag = 'input window, operand 5, single buffered']
    #allocation11 [shape = 'u8[32768]{0}', space=vmem, size = 0x8000, scoped, tag = 'input window, operand 7, single buffered']
    #allocation12 [shape = 's32[1]{0}', space=sflag, size = 0x4, scoped, tag = 'scoped memory for tpu_custom_call.1']
    #allocation13 [shape = 'u8[32768]{0}', space=vmem, size = 0x8000, scoped, tag = 'output window, operand 0, single buffered']
    %14 = vsyncpa [#allocation3], 0
    %15 = vsyncpa [#allocation6], 0
    %16 = vsyncpa [#allocation9], 0
    %17 = vsyncpa [#allocation12], 0
    %18 = vsyncpa [#allocation4], 0
    // Predicated region
    $region2: #{tpu_custom_call.1} parent=1 // pred_check
      _
    $region3: #{tpu_custom_call.1} parent=1 // pred_check_branch
      %20 = sbr.rel (0) target = $region5
    $region4: #{tpu_custom_call.1} parent=1 // pred_region
      %22 = vsyncadd [#allocation3], 0
      %s23 = sshll.u32 %s0, 4
      %s24 = int_to_ptr.hbm [resolvable:$true] %s23
      %s25 = sshll.u32 [#allocation2], 4
      %s26 = int_to_ptr.vmem [resolvable:$true] %s25
      %31 = dma.hbm_to_vmem [thread:$0]  %s24, 1024, %s26, [#allocation3], 128, 128, 8
    $region5: #{tpu_custom_call.1} parent=1 // pred_fallthru
      _
    // Predicated region
    $region6: #{tpu_custom_call.1} parent=1 // pred_check
      _
    $region7: #{tpu_custom_call.1} parent=1 // pred_check_branch
      %33 = sbr.rel (0) target = $region9
    $region8: #{tpu_custom_call.1} parent=1 // pred_region
      %35 = vsyncadd [#allocation6], 0
      %s36 = sshll.u32 %s1, 4
      %s37 = int_to_ptr.hbm [resolvable:$true] %s36
      %s38 = sshll.u32 [#allocation5], 4
      %s39 = int_to_ptr.vmem [resolvable:$true] %s38
      %44 = dma.hbm_to_vmem [thread:$0]  %s37, 2048, %s39, [#allocation6], 128, 128, 8
    $region9: #{tpu_custom_call.1} parent=1 // pred_fallthru
      _
    // Predicated region
    $region10: #{tpu_custom_call.1} parent=1 // pred_check
      _
    $region11: #{tpu_custom_call.1} parent=1 // pred_check_branch
      %46 = sbr.rel (0) target = $region13
    $region12: #{tpu_custom_call.1} parent=1 // pred_region
      %48 = vsyncadd [#allocation6], 0
      %s50 = sshll.u32 %s2, 4
      %s51 = int_to_ptr.hbm [resolvable:$true] %s50
      %s52 = sshll.u32 [#allocation7], 4
      %s53 = int_to_ptr.vmem [resolvable:$true] %s52
      %55 = dma.hbm_to_vmem [thread:$0]  %s51, 32, %s53, [#allocation6]
    $region13: #{tpu_custom_call.1} parent=1 // pred_fallthru
      _
    // Predicated region
    $region14: #{tpu_custom_call.1} parent=1 // pred_check
      _
    $region15: #{tpu_custom_call.1} parent=1 // pred_check_branch
      %57 = sbr.rel (0) target = $region17
    $region16: #{tpu_custom_call.1} parent=1 // pred_region
      %59 = vsyncadd [#allocation9], 0
      %s60 = sshll.u32 %s3, 4
      %s61 = int_to_ptr.hbm [resolvable:$true] %s60
      %s62 = sshll.u32 [#allocation8], 4
      %s63 = int_to_ptr.vmem [resolvable:$true] %s62
      %68 = dma.hbm_to_vmem [thread:$0]  %s61, 2048, %s63, [#allocation9], 64, 64, 4
    $region17: #{tpu_custom_call.1} parent=1 // pred_fallthru
      _
    // Predicated region
    $region18: #{tpu_custom_call.1} parent=1 // pred_check
      _
    $region19: #{tpu_custom_call.1} parent=1 // pred_check_branch
      %70 = sbr.rel (0) target = $region21
    $region20: #{tpu_custom_call.1} parent=1 // pred_region
      _
    $region21: #{tpu_custom_call.1} parent=1 // pred_fallthru
      _
    // Predicated region
    $region22: #{tpu_custom_call.1} parent=1 // pred_check
      _
    $region23: #{tpu_custom_call.1} parent=1 // pred_check_branch
      %72 = sbr.rel (0) target = $region25
    $region24: #{tpu_custom_call.1} parent=1 // pred_region
      %74 = vsyncadd [#allocation9], 0
      %s75 = sshll.u32 %s5, 4
      %s76 = int_to_ptr.hbm [resolvable:$true] %s75
      %s77 = sshll.u32 [#allocation10], 4
      %s78 = int_to_ptr.vmem [resolvable:$true] %s77
      %83 = dma.hbm_to_vmem [thread:$0]  %s76, 1024, %s78, [#allocation9], 64, 64, 4
    $region25: #{tpu_custom_call.1} parent=1 // pred_fallthru
      _
    // Predicated region
    $region26: #{tpu_custom_call.1} parent=1 // pred_check
      _
    $region27: #{tpu_custom_call.1} parent=1 // pred_check_branch
      %85 = sbr.rel (0) target = $region29
    $region28: #{tpu_custom_call.1} parent=1 // pred_region
      _
    $region29: #{tpu_custom_call.1} parent=1 // pred_fallthru
      _
    // Predicated region
    $region30: #{tpu_custom_call.1} parent=1 // pred_check
      _
    $region31: #{tpu_custom_call.1} parent=1 // pred_check_branch
      %87 = sbr.rel (0) target = $region33
    $region32: #{tpu_custom_call.1} parent=1 // pred_region
      %89 = vsyncadd [#allocation12], 0
      %s90 = sshll.u32 %s7, 4
      %s91 = int_to_ptr.hbm [resolvable:$true] %s90
      %s92 = sshll.u32 [#allocation11], 4
      %s93 = int_to_ptr.vmem [resolvable:$true] %s92
      %98 = dma.hbm_to_vmem [thread:$0]  %s91, 1024, %s93, [#allocation12], 64, 64, 4
    $region33: #{tpu_custom_call.1} parent=1 // pred_fallthru
      _
    // Predicated region
    $region34: #{tpu_custom_call.1} parent=1 // pred_check
      _
    $region35: #{tpu_custom_call.1} parent=1 // pred_check_branch
      %100 = sbr.rel (0) target = $region37
    $region36: #{tpu_custom_call.1} parent=1 // pred_region
      _
    $region37: #{tpu_custom_call.1} parent=1 // pred_fallthru
      _
    // Predicated region
    $region38: #{tpu_custom_call.1} parent=1 // pred_check
      _
    $region39: #{tpu_custom_call.1} parent=1 // pred_check_branch
      %102 = sbr.rel (0) target = $region41
    $region40: #{tpu_custom_call.1} parent=1 // pred_region
      %104 = dma.done [#allocation3], 1024
    $region41: #{tpu_custom_call.1} parent=1 // pred_fallthru
      _
    // Predicated region
    $region42: #{tpu_custom_call.1} parent=1 // pred_check
      _
    $region43: #{tpu_custom_call.1} parent=1 // pred_check_branch
      %106 = sbr.rel (0) target = $region45
    $region44: #{tpu_custom_call.1} parent=1 // pred_region
      %108 = dma.done [#allocation6], 2048
    $region45: #{tpu_custom_call.1} parent=1 // pred_fallthru
      _
    // Predicated region
    $region46: #{tpu_custom_call.1} parent=1 // pred_check
      _
    $region47: #{tpu_custom_call.1} parent=1 // pred_check_branch
      %110 = sbr.rel (0) target = $region49
    $region48: #{tpu_custom_call.1} parent=1 // pred_region
      %112 = dma.done [#allocation6], 32
    $region49: #{tpu_custom_call.1} parent=1 // pred_fallthru
      _
    // Predicated region
    $region50: #{tpu_custom_call.1} parent=1 // pred_check
      _
    $region51: #{tpu_custom_call.1} parent=1 // pred_check_branch
      %114 = sbr.rel (0) target = $region53
    $region52: #{tpu_custom_call.1} parent=1 // pred_region
      %116 = dma.done [#allocation9], 2048
    $region53: #{tpu_custom_call.1} parent=1 // pred_fallthru
      _
    // Predicated region
    $region54: #{tpu_custom_call.1} parent=1 // pred_check
      _
    $region55: #{tpu_custom_call.1} parent=1 // pred_check_branch
      %118 = sbr.rel (0) target = $region57
    $region56: #{tpu_custom_call.1} parent=1 // pred_region
      %120 = dma.done [#allocation9], 1024
    $region57: #{tpu_custom_call.1} parent=1 // pred_fallthru
      _
    // Predicated region
    $region58: #{tpu_custom_call.1} parent=1 // pred_check
      _
    $region59: #{tpu_custom_call.1} parent=1 // pred_check_branch
      %122 = sbr.rel (0) target = $region61
    $region60: #{tpu_custom_call.1} parent=1 // pred_region
      %124 = dma.done [#allocation12], 1024
    $region61: #{tpu_custom_call.1} parent=1 // pred_fallthru
      _
    %v125 = vld [vmem:[#allocation2] sm:$0xff]
    %v126 = vld [vmem:[#allocation2 + $0x8] sm:$0xff]
    %v127 = vld [vmem:[#allocation2 + $0x10] sm:$0xff]
    %v128 = vld [vmem:[#allocation2 + $0x18] sm:$0xff]
    %v129 = vld [vmem:[#allocation2 + $0x20] sm:$0xff]
    %v130 = vld [vmem:[#allocation2 + $0x28] sm:$0xff]
    %v131 = vld [vmem:[#allocation2 + $0x30] sm:$0xff]
    %v132 = vld [vmem:[#allocation2 + $0x38] sm:$0xff]
    %v133 = vpack.c.bf16 %v126, %v125
    %v134 = vpack.c.bf16 %v128, %v127
    %v135 = vpack.c.bf16 %v130, %v129
    %v136 = vpack.c.bf16 %v132, %v131
    %v137 = vld [vmem:[#allocation5] sm:$0xff]
    %v138 = vld [vmem:[#allocation5 + $0x8] sm:$0xff]
    %v139 = vld [vmem:[#allocation5 + $0x10] sm:$0xff]
    %v140 = vld [vmem:[#allocation5 + $0x18] sm:$0xff]
    %v141 = vld [vmem:[#allocation5 + $0x20] sm:$0xff]
    %v142 = vld [vmem:[#allocation5 + $0x28] sm:$0xff]
    %v143 = vld [vmem:[#allocation5 + $0x30] sm:$0xff]
    %v144 = vld [vmem:[#allocation5 + $0x38] sm:$0xff]
    %v145 = vld [vmem:[#allocation5 + $0x40] sm:$0xff]
    %v146 = vld [vmem:[#allocation5 + $0x48] sm:$0xff]
    %v147 = vld [vmem:[#allocation5 + $0x50] sm:$0xff]
    %v148 = vld [vmem:[#allocation5 + $0x58] sm:$0xff]
    %v149 = vld [vmem:[#allocation5 + $0x60] sm:$0xff]
    %v150 = vld [vmem:[#allocation5 + $0x68] sm:$0xff]
    %v151 = vld [vmem:[#allocation5 + $0x70] sm:$0xff]
    %v152 = vld [vmem:[#allocation5 + $0x78] sm:$0xff]
    %v153 = vld [vmem:[#allocation7] sm:$0x3]
    %v155 = vperm.slane %v153, 0
    %v156 = vperm.slane %v153, 1
    %v175 = vunpack.c.l.b16 %v137
    %v176 = vunpack.c.h.b16 %v137
    %v177 = vunpack.c.l.b16 %v138
    %v178 = vunpack.c.h.b16 %v138
    %v179 = vunpack.c.l.b16 %v139
    %v180 = vunpack.c.h.b16 %v139
    %v181 = vunpack.c.l.b16 %v140
    %v182 = vunpack.c.h.b16 %v140
    %v183 = vunpack.c.l.b16 %v141
    %v184 = vunpack.c.h.b16 %v141
    %v185 = vunpack.c.l.b16 %v142
    %v186 = vunpack.c.h.b16 %v142
    %v187 = vunpack.c.l.b16 %v143
    %v188 = vunpack.c.h.b16 %v143
    %v189 = vunpack.c.l.b16 %v144
    %v190 = vunpack.c.h.b16 %v144
    %v191 = vunpack.c.l.b16 %v145
    %v192 = vunpack.c.h.b16 %v145
    %v193 = vunpack.c.l.b16 %v146
    %v194 = vunpack.c.h.b16 %v146
    %v195 = vunpack.c.l.b16 %v147
    %v196 = vunpack.c.h.b16 %v147
    %v197 = vunpack.c.l.b16 %v148
    %v198 = vunpack.c.h.b16 %v148
    %v199 = vunpack.c.l.b16 %v149
    %v200 = vunpack.c.h.b16 %v149
    %v201 = vunpack.c.l.b16 %v150
    %v202 = vunpack.c.h.b16 %v150
    %v203 = vunpack.c.l.b16 %v151
    %v204 = vunpack.c.h.b16 %v151
    %v205 = vunpack.c.l.b16 %v152
    %v206 = vunpack.c.h.b16 %v152
    %v207 = vpack.c.b16 %v177, %v175
    %v208 = vpack.c.b16 %v178, %v176
    %v209 = vpack.c.b16 %v181, %v179
    %v210 = vpack.c.b16 %v182, %v180
    %v211 = vpack.c.b16 %v185, %v183
    %v212 = vpack.c.b16 %v186, %v184
    %v213 = vpack.c.b16 %v189, %v187
    %v214 = vpack.c.b16 %v190, %v188
    %v215 = vpack.c.b16 %v193, %v191
    %v216 = vpack.c.b16 %v194, %v192
    %v217 = vpack.c.b16 %v197, %v195
    %v218 = vpack.c.b16 %v198, %v196
    %v219 = vpack.c.b16 %v201, %v199
    %v220 = vpack.c.b16 %v202, %v200
    %v221 = vpack.c.b16 %v205, %v203
    %v222 = vpack.c.b16 %v206, %v204
    %239 = vmatpush.bf16.msra.mxu0 %v221
    %240 = vmatpush.bf16.msra.mxu0 %v219
    %241 = vmatpush.bf16.msra.mxu0 %v217
    %242 = vmatpush.bf16.msra.mxu0 %v215
    %243 = vmatpush.bf16.msra.mxu0 %v213
    %244 = vmatpush.bf16.msra.mxu0 %v211
    %245 = vmatpush.bf16.msra.mxu0 %v209
    %246 = vmatpush.bf16.msra.mxu0 %v207
    %247 = vmatmul.bf16.gmra.mxu0 %v133
    %v248 = vpop.f32.mrf.mxu0
    %v249 = vadd.f32 %v155, %v248
    %v250 = vpop.f32.mrf.mxu0
    %v251 = vadd.f32 %v155, %v250
    %252 = vmatmul.bf16.gmra.mxu0 %v134
    %v253 = vpop.f32.mrf.mxu0
    %v254 = vadd.f32 %v155, %v253
    %v255 = vpop.f32.mrf.mxu0
    %v256 = vadd.f32 %v155, %v255
    %257 = vmatmul.bf16.gmra.mxu0 %v135
    %v258 = vpop.f32.mrf.mxu0
    %v259 = vadd.f32 %v155, %v258
    %v260 = vpop.f32.mrf.mxu0
    %v261 = vadd.f32 %v155, %v260
    %262 = vmatmul.bf16.gmra.mxu0 %v136
    %v263 = vpop.f32.mrf.mxu0
    %v264 = vadd.f32 %v155, %v263
    %v265 = vpop.f32.mrf.mxu0
    %v266 = vadd.f32 %v155, %v265
    %267 = vdwg.mxu0
    %268 = vmatpush.bf16.msra.mxu0 %v222
    %269 = vmatpush.bf16.msra.mxu0 %v220
    %270 = vmatpush.bf16.msra.mxu0 %v218
    %271 = vmatpush.bf16.msra.mxu0 %v216
    %272 = vmatpush.bf16.msra.mxu0 %v214
    %273 = vmatpush.bf16.msra.mxu0 %v212
    %274 = vmatpush.bf16.msra.mxu0 %v210
    %275 = vmatpush.bf16.msra.mxu0 %v208
    %276 = vmatmul.bf16.gmra.mxu0 %v133
    %v277 = vpop.f32.mrf.mxu0
    %v278 = vadd.f32 %v156, %v277
    %v279 = vpop.f32.mrf.mxu0
    %v280 = vadd.f32 %v156, %v279
    %281 = vmatmul.bf16.gmra.mxu0 %v134
    %v282 = vpop.f32.mrf.mxu0
    %v283 = vadd.f32 %v156, %v282
    %v284 = vpop.f32.mrf.mxu0
    %v285 = vadd.f32 %v156, %v284
    %286 = vmatmul.bf16.gmra.mxu0 %v135
    %v287 = vpop.f32.mrf.mxu0
    %v288 = vadd.f32 %v156, %v287
    %v289 = vpop.f32.mrf.mxu0
    %v290 = vadd.f32 %v156, %v289
    %291 = vmatmul.bf16.gmra.mxu0 %v136
    %v292 = vpop.f32.mrf.mxu0
    %v293 = vadd.f32 %v156, %v292
    %v294 = vpop.f32.mrf.mxu0
    %v295 = vadd.f32 %v156, %v294
    %296 = vdwg.mxu0
    %v297 = vmax.f32 %v249, 0.0
    %v298 = vmax.f32 %v278, 0.0
    %v299 = vmax.f32 %v251, 0.0
    %v300 = vmax.f32 %v280, 0.0
    %v301 = vmax.f32 %v254, 0.0
    %v302 = vmax.f32 %v283, 0.0
    %v303 = vmax.f32 %v256, 0.0
    %v304 = vmax.f32 %v285, 0.0
    %v305 = vmax.f32 %v259, 0.0
    %v306 = vmax.f32 %v288, 0.0
    %v307 = vmax.f32 %v261, 0.0
    %v308 = vmax.f32 %v290, 0.0
    %v309 = vmax.f32 %v264, 0.0
    %v310 = vmax.f32 %v293, 0.0
    %v311 = vmax.f32 %v266, 0.0
    %v312 = vmax.f32 %v295, 0.0
    %v313 = vpack.c.bf16 %v299, %v297
    %v314 = vpack.c.bf16 %v300, %v298
    %v315 = vpack.c.bf16 %v303, %v301
    %v316 = vpack.c.bf16 %v304, %v302
    %v317 = vpack.c.bf16 %v307, %v305
    %v318 = vpack.c.bf16 %v308, %v306
    %v319 = vpack.c.bf16 %v311, %v309
    %v320 = vpack.c.bf16 %v312, %v310
    %v321 = vld [vmem:[#allocation8] sm:$0xf]
    %v322 = vld [vmem:[#allocation8 + $0x4] sm:$0xf]
    %v323 = vld [vmem:[#allocation8 + $0x8] sm:$0xf]
    %v324 = vld [vmem:[#allocation8 + $0xc] sm:$0xf]
    %v325 = vld [vmem:[#allocation8 + $0x10] sm:$0xf]
    %v326 = vld [vmem:[#allocation8 + $0x14] sm:$0xf]
    %v327 = vld [vmem:[#allocation8 + $0x18] sm:$0xf]
    %v328 = vld [vmem:[#allocation8 + $0x1c] sm:$0xf]
    %v329 = vld [vmem:[#allocation8 + $0x20] sm:$0xf]
    %v330 = vld [vmem:[#allocation8 + $0x24] sm:$0xf]
    %v331 = vld [vmem:[#allocation8 + $0x28] sm:$0xf]
    %v332 = vld [vmem:[#allocation8 + $0x2c] sm:$0xf]
    %v333 = vld [vmem:[#allocation8 + $0x30] sm:$0xf]
    %v334 = vld [vmem:[#allocation8 + $0x34] sm:$0xf]
    %v335 = vld [vmem:[#allocation8 + $0x38] sm:$0xf]
    %v336 = vld [vmem:[#allocation8 + $0x3c] sm:$0xf]
    %v337 = vld [vmem:[#allocation8 + $0x40] sm:$0xf]
    %v338 = vld [vmem:[#allocation8 + $0x44] sm:$0xf]
    %v339 = vld [vmem:[#allocation8 + $0x48] sm:$0xf]
    %v340 = vld [vmem:[#allocation8 + $0x4c] sm:$0xf]
    %v341 = vld [vmem:[#allocation8 + $0x50] sm:$0xf]
    %v342 = vld [vmem:[#allocation8 + $0x54] sm:$0xf]
    %v343 = vld [vmem:[#allocation8 + $0x58] sm:$0xf]
    %v344 = vld [vmem:[#allocation8 + $0x5c] sm:$0xf]
    %v345 = vld [vmem:[#allocation8 + $0x60] sm:$0xf]
    %v346 = vld [vmem:[#allocation8 + $0x64] sm:$0xf]
    %v347 = vld [vmem:[#allocation8 + $0x68] sm:$0xf]
    %v348 = vld [vmem:[#allocation8 + $0x6c] sm:$0xf]
    %v349 = vld [vmem:[#allocation8 + $0x70] sm:$0xf]
    %v350 = vld [vmem:[#allocation8 + $0x74] sm:$0xf]
    %v351 = vld [vmem:[#allocation8 + $0x78] sm:$0xf]
    %v352 = vld [vmem:[#allocation8 + $0x7c] sm:$0xf]
    %v353 = vld [vmem:[%s4] sm:$0x1]
    %v355 = vperm.slane %v353, 0
    %v389 = vunpack.c.l.b16 %v321
    %v390 = vunpack.c.l.b16 %v322
    %v391 = vunpack.c.l.b16 %v323
    %v392 = vunpack.c.l.b16 %v324
    %v393 = vunpack.c.l.b16 %v325
    %v394 = vunpack.c.l.b16 %v326
    %v395 = vunpack.c.l.b16 %v327
    %v396 = vunpack.c.l.b16 %v328
    %v397 = vunpack.c.l.b16 %v329
    %v398 = vunpack.c.l.b16 %v330
    %v399 = vunpack.c.l.b16 %v331
    %v400 = vunpack.c.l.b16 %v332
    %v401 = vunpack.c.l.b16 %v333
    %v402 = vunpack.c.l.b16 %v334
    %v403 = vunpack.c.l.b16 %v335
    %v404 = vunpack.c.l.b16 %v336
    %v405 = vunpack.c.l.b16 %v337
    %v406 = vunpack.c.l.b16 %v338
    %v407 = vunpack.c.l.b16 %v339
    %v408 = vunpack.c.l.b16 %v340
    %v409 = vunpack.c.l.b16 %v341
    %v410 = vunpack.c.l.b16 %v342
    %v411 = vunpack.c.l.b16 %v343
    %v412 = vunpack.c.l.b16 %v344
    %v413 = vunpack.c.l.b16 %v345
    %v414 = vunpack.c.l.b16 %v346
    %v415 = vunpack.c.l.b16 %v347
    %v416 = vunpack.c.l.b16 %v348
    %v417 = vunpack.c.l.b16 %v349
    %v418 = vunpack.c.l.b16 %v350
    %v419 = vunpack.c.l.b16 %v351
    %v420 = vunpack.c.l.b16 %v352
    %v421 = vpack.c.b16 %v390, %v389
    %v422 = vpack.c.b16 %v392, %v391
    %v423 = vpack.c.b16 %v394, %v393
    %v424 = vpack.c.b16 %v396, %v395
    %v425 = vpack.c.b16 %v398, %v397
    %v426 = vpack.c.b16 %v400, %v399
    %v427 = vpack.c.b16 %v402, %v401
    %v428 = vpack.c.b16 %v404, %v403
    %v429 = vpack.c.b16 %v406, %v405
    %v430 = vpack.c.b16 %v408, %v407
    %v431 = vpack.c.b16 %v410, %v409
    %v432 = vpack.c.b16 %v412, %v411
    %v433 = vpack.c.b16 %v414, %v413
    %v434 = vpack.c.b16 %v416, %v415
    %v435 = vpack.c.b16 %v418, %v417
    %v436 = vpack.c.b16 %v420, %v419
    %453 = vmatpush.bf16.msra.mxu0 %v428
    %454 = vmatpush.bf16.msra.mxu0 %v427
    %455 = vmatpush.bf16.msra.mxu0 %v426
    %456 = vmatpush.bf16.msra.mxu0 %v425
    %457 = vmatpush.bf16.msra.mxu0 %v424
    %458 = vmatpush.bf16.msra.mxu0 %v423
    %459 = vmatpush.bf16.msra.mxu0 %v422
    %460 = vmatpush.bf16.msra.mxu0 %v421
    %461 = vmatmul.bf16.gmra.mxu0 %v313
    %v462 = vpop.f32.mrf.mxu0
    %v463 = vadd.f32 %v355, %v462
    %v464 = vpop.f32.mrf.mxu0
    %v465 = vadd.f32 %v355, %v464
    %466 = vmatmul.bf16.gmra.mxu0 %v315
    %v467 = vpop.f32.mrf.mxu0
    %v468 = vadd.f32 %v355, %v467
    %v469 = vpop.f32.mrf.mxu0
    %v470 = vadd.f32 %v355, %v469
    %471 = vmatmul.bf16.gmra.mxu0 %v317
    %v472 = vpop.f32.mrf.mxu0
    %v473 = vadd.f32 %v355, %v472
    %v474 = vpop.f32.mrf.mxu0
    %v475 = vadd.f32 %v355, %v474
    %476 = vmatmul.bf16.gmra.mxu0 %v319
    %v477 = vpop.f32.mrf.mxu0
    %v478 = vadd.f32 %v355, %v477
    %v479 = vpop.f32.mrf.mxu0
    %v480 = vadd.f32 %v355, %v479
    %481 = vdwg.mxu0
    %482 = vmatpush.bf16.msra.mxu0 %v436
    %483 = vmatpush.bf16.msra.mxu0 %v435
    %484 = vmatpush.bf16.msra.mxu0 %v434
    %485 = vmatpush.bf16.msra.mxu0 %v433
    %486 = vmatpush.bf16.msra.mxu0 %v432
    %487 = vmatpush.bf16.msra.mxu0 %v431
    %488 = vmatpush.bf16.msra.mxu0 %v430
    %489 = vmatpush.bf16.msra.mxu0 %v429
    %490 = vmatmul.bf16.gmra.mxu0 %v314
    %v491 = vpop.f32.mrf.mxu0
    %v492 = vadd.f32 %v463, %v491
    %v493 = vpop.f32.mrf.mxu0
    %v494 = vadd.f32 %v465, %v493
    %495 = vmatmul.bf16.gmra.mxu0 %v316
    %v496 = vpop.f32.mrf.mxu0
    %v497 = vadd.f32 %v468, %v496
    %v498 = vpop.f32.mrf.mxu0
    %v499 = vadd.f32 %v470, %v498
    %500 = vmatmul.bf16.gmra.mxu0 %v318
    %v501 = vpop.f32.mrf.mxu0
    %v502 = vadd.f32 %v473, %v501
    %v503 = vpop.f32.mrf.mxu0
    %v504 = vadd.f32 %v475, %v503
    %505 = vmatmul.bf16.gmra.mxu0 %v320
    %v506 = vpop.f32.mrf.mxu0
    %v507 = vadd.f32 %v478, %v506
    %v508 = vpop.f32.mrf.mxu0
    %v509 = vadd.f32 %v480, %v508
    %510 = vdwg.mxu0
    %v511 = vmax.f32 %v492, 0.0
    %v512 = vmax.f32 %v494, 0.0
    %v513 = vmax.f32 %v497, 0.0
    %v514 = vmax.f32 %v499, 0.0
    %v515 = vmax.f32 %v502, 0.0
    %v516 = vmax.f32 %v504, 0.0
    %v517 = vmax.f32 %v507, 0.0
    %v518 = vmax.f32 %v509, 0.0
    %v519 = vpack.c.bf16 %v512, %v511
    %v520 = vpack.c.bf16 %v514, %v513
    %v521 = vpack.c.bf16 %v516, %v515
    %v522 = vpack.c.bf16 %v518, %v517
    %v523 = vld [vmem:[#allocation10] sm:$0xf]
    %v524 = vld [vmem:[#allocation10 + $0x4] sm:$0xf]
    %v525 = vld [vmem:[#allocation10 + $0x8] sm:$0xf]
    %v526 = vld [vmem:[#allocation10 + $0xc] sm:$0xf]
    %v527 = vld [vmem:[#allocation10 + $0x10] sm:$0xf]
    %v528 = vld [vmem:[#allocation10 + $0x14] sm:$0xf]
    %v529 = vld [vmem:[#allocation10 + $0x18] sm:$0xf]
    %v530 = vld [vmem:[#allocation10 + $0x1c] sm:$0xf]
    %v531 = vld [vmem:[#allocation10 + $0x20] sm:$0xf]
    %v532 = vld [vmem:[#allocation10 + $0x24] sm:$0xf]
    %v533 = vld [vmem:[#allocation10 + $0x28] sm:$0xf]
    %v534 = vld [vmem:[#allocation10 + $0x2c] sm:$0xf]
    %v535 = vld [vmem:[#allocation10 + $0x30] sm:$0xf]
    %v536 = vld [vmem:[#allocation10 + $0x34] sm:$0xf]
    %v537 = vld [vmem:[#allocation10 + $0x38] sm:$0xf]
    %v538 = vld [vmem:[#allocation10 + $0x3c] sm:$0xf]
    %v539 = vld [vmem:[%s6] sm:$0x1]
    %v541 = vperm.slane %v539, 0
    %v559 = vunpack.c.l.b16 %v523
    %v560 = vunpack.c.l.b16 %v524
    %v561 = vunpack.c.l.b16 %v525
    %v562 = vunpack.c.l.b16 %v526
    %v563 = vunpack.c.l.b16 %v527
    %v564 = vunpack.c.l.b16 %v528
    %v565 = vunpack.c.l.b16 %v529
    %v566 = vunpack.c.l.b16 %v530
    %v567 = vunpack.c.l.b16 %v531
    %v568 = vunpack.c.l.b16 %v532
    %v569 = vunpack.c.l.b16 %v533
    %v570 = vunpack.c.l.b16 %v534
    %v571 = vunpack.c.l.b16 %v535
    %v572 = vunpack.c.l.b16 %v536
    %v573 = vunpack.c.l.b16 %v537
    %v574 = vunpack.c.l.b16 %v538
    %v575 = vpack.c.b16 %v560, %v559
    %v576 = vpack.c.b16 %v562, %v561
    %v577 = vpack.c.b16 %v564, %v563
    %v578 = vpack.c.b16 %v566, %v565
    %v579 = vpack.c.b16 %v568, %v567
    %v580 = vpack.c.b16 %v570, %v569
    %v581 = vpack.c.b16 %v572, %v571
    %v582 = vpack.c.b16 %v574, %v573
    %591 = vmatpush.bf16.msra.mxu0 %v582
    %592 = vmatpush.bf16.msra.mxu0 %v581
    %593 = vmatpush.bf16.msra.mxu0 %v580
    %594 = vmatpush.bf16.msra.mxu0 %v579
    %595 = vmatpush.bf16.msra.mxu0 %v578
    %596 = vmatpush.bf16.msra.mxu0 %v577
    %597 = vmatpush.bf16.msra.mxu0 %v576
    %598 = vmatpush.bf16.msra.mxu0 %v575
    %599 = vmatmul.bf16.gmra.mxu0 %v519
    %v600 = vpop.f32.mrf.mxu0
    %v601 = vadd.f32 %v541, %v600
    %v602 = vpop.f32.mrf.mxu0
    %v603 = vadd.f32 %v541, %v602
    %604 = vmatmul.bf16.gmra.mxu0 %v520
    %v605 = vpop.f32.mrf.mxu0
    %v606 = vadd.f32 %v541, %v605
    %v607 = vpop.f32.mrf.mxu0
    %v608 = vadd.f32 %v541, %v607
    %609 = vmatmul.bf16.gmra.mxu0 %v521
    %v610 = vpop.f32.mrf.mxu0
    %v611 = vadd.f32 %v541, %v610
    %v612 = vpop.f32.mrf.mxu0
    %v613 = vadd.f32 %v541, %v612
    %614 = vmatmul.bf16.gmra.mxu0 %v522
    %v615 = vpop.f32.mrf.mxu0
    %v616 = vadd.f32 %v541, %v615
    %v617 = vpop.f32.mrf.mxu0
    %v618 = vadd.f32 %v541, %v617
    %619 = vdwg.mxu0
    %v620 = vmax.f32 %v601, 0.0
    %v621 = vmax.f32 %v603, 0.0
    %v622 = vmax.f32 %v606, 0.0
    %v623 = vmax.f32 %v608, 0.0
    %v624 = vmax.f32 %v611, 0.0
    %v625 = vmax.f32 %v613, 0.0
    %v626 = vmax.f32 %v616, 0.0
    %v627 = vmax.f32 %v618, 0.0
    %v628 = vpack.c.bf16 %v621, %v620
    %v629 = vpack.c.bf16 %v623, %v622
    %v630 = vpack.c.bf16 %v625, %v624
    %v631 = vpack.c.bf16 %v627, %v626
    %v632 = vld [vmem:[#allocation11] sm:$0xf]
    %v633 = vld [vmem:[#allocation11 + $0x4] sm:$0xf]
    %v634 = vld [vmem:[#allocation11 + $0x8] sm:$0xf]
    %v635 = vld [vmem:[#allocation11 + $0xc] sm:$0xf]
    %v636 = vld [vmem:[#allocation11 + $0x10] sm:$0xf]
    %v637 = vld [vmem:[#allocation11 + $0x14] sm:$0xf]
    %v638 = vld [vmem:[#allocation11 + $0x18] sm:$0xf]
    %v639 = vld [vmem:[#allocation11 + $0x1c] sm:$0xf]
    %v640 = vld [vmem:[#allocation11 + $0x20] sm:$0xf]
    %v641 = vld [vmem:[#allocation11 + $0x24] sm:$0xf]
    %v642 = vld [vmem:[#allocation11 + $0x28] sm:$0xf]
    %v643 = vld [vmem:[#allocation11 + $0x2c] sm:$0xf]
    %v644 = vld [vmem:[#allocation11 + $0x30] sm:$0xf]
    %v645 = vld [vmem:[#allocation11 + $0x34] sm:$0xf]
    %v646 = vld [vmem:[#allocation11 + $0x38] sm:$0xf]
    %v647 = vld [vmem:[#allocation11 + $0x3c] sm:$0xf]
    %v648 = vld [vmem:[%s8] sm:$0x1]
    %v650 = vperm.slane %v648, 0
    %v668 = vunpack.c.l.b16 %v632
    %v669 = vunpack.c.l.b16 %v633
    %v670 = vunpack.c.l.b16 %v634
    %v671 = vunpack.c.l.b16 %v635
    %v672 = vunpack.c.l.b16 %v636
    %v673 = vunpack.c.l.b16 %v637
    %v674 = vunpack.c.l.b16 %v638
    %v675 = vunpack.c.l.b16 %v639
    %v676 = vunpack.c.l.b16 %v640
    %v677 = vunpack.c.l.b16 %v641
    %v678 = vunpack.c.l.b16 %v642
    %v679 = vunpack.c.l.b16 %v643
    %v680 = vunpack.c.l.b16 %v644
    %v681 = vunpack.c.l.b16 %v645
    %v682 = vunpack.c.l.b16 %v646
    %v683 = vunpack.c.l.b16 %v647
    %v684 = vpack.c.b16 %v669, %v668
    %v685 = vpack.c.b16 %v671, %v670
    %v686 = vpack.c.b16 %v673, %v672
    %v687 = vpack.c.b16 %v675, %v674
    %v688 = vpack.c.b16 %v677, %v676
    %v689 = vpack.c.b16 %v679, %v678
    %v690 = vpack.c.b16 %v681, %v680
    %v691 = vpack.c.b16 %v683, %v682
    %700 = vmatpush.bf16.msra.mxu0 %v691
    %701 = vmatpush.bf16.msra.mxu0 %v690
    %702 = vmatpush.bf16.msra.mxu0 %v689
    %703 = vmatpush.bf16.msra.mxu0 %v688
    %704 = vmatpush.bf16.msra.mxu0 %v687
    %705 = vmatpush.bf16.msra.mxu0 %v686
    %706 = vmatpush.bf16.msra.mxu0 %v685
    %707 = vmatpush.bf16.msra.mxu0 %v684
    %708 = vmatmul.bf16.gmra.mxu0 %v628
    %v709 = vpop.f32.mrf.mxu0
    %v710 = vadd.f32 %v650, %v709
    %v711 = vpop.f32.mrf.mxu0
    %v712 = vadd.f32 %v650, %v711
    %713 = vmatmul.bf16.gmra.mxu0 %v629
    %v714 = vpop.f32.mrf.mxu0
    %v715 = vadd.f32 %v650, %v714
    %v716 = vpop.f32.mrf.mxu0
    %v717 = vadd.f32 %v650, %v716
    %718 = vmatmul.bf16.gmra.mxu0 %v630
    %v719 = vpop.f32.mrf.mxu0
    %v720 = vadd.f32 %v650, %v719
    %v721 = vpop.f32.mrf.mxu0
    %v722 = vadd.f32 %v650, %v721
    %723 = vmatmul.bf16.gmra.mxu0 %v631
    %v724 = vpop.f32.mrf.mxu0
    %v725 = vadd.f32 %v650, %v724
    %v726 = vpop.f32.mrf.mxu0
    %v727 = vadd.f32 %v650, %v726
    %728 = vdwg.mxu0
    %729 = vst [vmem:[#allocation13] sm:$0xff] %v710
    %730 = vst [vmem:[#allocation13 + $0x8] sm:$0xff] %v712
    %731 = vst [vmem:[#allocation13 + $0x10] sm:$0xff] %v715
    %732 = vst [vmem:[#allocation13 + $0x18] sm:$0xff] %v717
    %733 = vst [vmem:[#allocation13 + $0x20] sm:$0xff] %v720
    %734 = vst [vmem:[#allocation13 + $0x28] sm:$0xff] %v722
    %735 = vst [vmem:[#allocation13 + $0x30] sm:$0xff] %v725
    %736 = vst [vmem:[#allocation13 + $0x38] sm:$0xff] %v727
    // Predicated region
    $region62: #{tpu_custom_call.1} parent=1 // pred_check
      _
    $region63: #{tpu_custom_call.1} parent=1 // pred_check_branch
      %738 = sbr.rel (0) target = $region65
    $region64: #{tpu_custom_call.1} parent=1 // pred_region
      %740 = vsyncadd [#allocation4], 0
      %s741 = sshll.u32 [#allocation13], 4
      %s742 = int_to_ptr.vmem [resolvable:$true] %s741
      %s743 = sshll.u32 %s9, 4
      %s744 = int_to_ptr.hbm [resolvable:$true] %s743
      %749 = dma.vmem_to_hbm [thread:$0]  %s742, 1024, %s744, [#allocation4], 128, 128, 8
    $region65: #{tpu_custom_call.1} parent=1 // pred_fallthru
      _
    // Predicated region
    $region66: #{tpu_custom_call.1} parent=1 // pred_check
      _
    $region67: #{tpu_custom_call.1} parent=1 // pred_check_branch
      %751 = sbr.rel (0) target = $region69
    $region68: #{tpu_custom_call.1} parent=1 // pred_region
      %753 = dma.done [#allocation4], 1024
    $region69: #{tpu_custom_call.1} parent=1 // pred_fallthru
      _
    %754 = vsyncpa [#allocation3], 1
    %755 = vsyncpa [#allocation6], 1
    %756 = vsyncpa [#allocation9], 1
    %757 = vsyncpa [#allocation12], 1
    %758 = vsyncpa [#allocation4], 1

// kernel: tpu_custom_call.1
$region0: #{tpu_custom_call.1}
  #allocation0 [shape = 'u32[]', space=smem, size = 0x4, offset = 0x4, fixed_abs, tag = 'smem constant byte address 0x4 - core index']
  #allocation1 [shape = 'u32[72,128]{1,0:T(1,128)}', space=vmem, size = 0x9000, scoped, tag = 'internal scratch']
  %s0 = inlined_call_operand.hbm [shape: f32[64,128], index: 0, kind: input, shape index: {}]
  %s1 = inlined_call_operand.hbm [shape: bf16[128,256], index: 1, kind: input, shape index: {}]
  %s2 = inlined_call_operand.hbm [shape: f32[1,256], index: 2, kind: input, shape index: {}]
  %s3 = inlined_call_operand.hbm [shape: bf16[256,128], index: 3, kind: input, shape index: {}]
  %s4 = inlined_call_operand.vmem [shape: f32[1,128], index: 4, kind: input, shape index: {}]
  %s5 = inlined_call_operand.hbm [shape: bf16[128,128], index: 5, kind: input, shape index: {}]
  %s6 = inlined_call_operand.vmem [shape: f32[1,128], index: 6, kind: input, shape index: {}]
  %s7 = inlined_call_operand.hbm [shape: bf16[128,128], index: 7, kind: input, shape index: {}]
  %s8 = inlined_call_operand.vmem [shape: f32[1,128], index: 8, kind: input, shape index: {}]
  %s9 = inlined_call_operand.hbm [shape: f32[64,128], index: 9, kind: output, shape index: {}]
  %s10 = sld [smem:[#allocation0]]
  $region70: #{tpu_custom_call.1} parent=0
    _
  %s12 = ssub.s32 1, %s10
  %s13 = scalar_select 0, %s12, %s10
  $region1: #{tpu_custom_call.1} parent=0
    #allocation2 [shape = 'u8[32768]{0}', space=vmem, size = 0x8000, scoped, tag = 'input window, operand 0, single buffered']
    #allocation3 [shape = 's32[1]{0}', space=sflag, size = 0x4, scoped, tag = 'scoped memory for tpu_custom_call.1']
    #allocation4 [shape = 's32[1]{0}', space=sflag, size = 0x4, scoped, tag = 'scoped memory for tpu_custom_call.1']
    #allocation5 [shape = 'u8[65536]{0}', space=vmem, size = 0x10000, scoped, tag = 'input window, operand 1, single buffered']
    #allocation6 [shape = 's32[1]{0}', space=sflag, size = 0x4, scoped, tag = 'scoped memory for tpu_custom_call.1']
    #allocation7 [shape = 'u8[1024]{0}', space=vmem, size = 0x400, scoped, tag = 'input window, operand 2, single buffered']
    #allocation8 [shape = 'u8[65536]{0}', space=vmem, size = 0x10000, scoped, tag = 'input window, operand 3, single buffered']
    #allocation9 [shape = 's32[1]{0}', space=sflag, size = 0x4, scoped, tag = 'scoped memory for tpu_custom_call.1']
    #allocation10 [shape = 'u8[32768]{0}', space=vmem, size = 0x8000, scoped, tag = 'input window, operand 5, single buffered']
    #allocation11 [shape = 'u8[32768]{0}', space=vmem, size = 0x8000, scoped, tag = 'input window, operand 7, single buffered']
    #allocation12 [shape = 's32[1]{0}', space=sflag, size = 0x4, scoped, tag = 'scoped memory for tpu_custom_call.1']
    #allocation13 [shape = 'u8[32768]{0}', space=vmem, size = 0x8000, scoped, tag = 'output window, operand 0, single buffered']
    %14 = vsyncpa [#allocation3], 0
    %15 = vsyncpa [#allocation6], 0
    %16 = vsyncpa [#allocation9], 0
    %17 = vsyncpa [#allocation12], 0
    %18 = vsyncpa [#allocation4], 0
    // Predicated region
    $region2: #{tpu_custom_call.1} parent=1 // pred_check
      _
    $region3: #{tpu_custom_call.1} parent=1 // pred_check_branch
      %20 = sbr.rel (0) target = $region5
    $region4: #{tpu_custom_call.1} parent=1 // pred_region
      %22 = vsyncadd [#allocation3], 0
      %s23 = sshll.u32 %s0, 4
      %s24 = int_to_ptr.hbm [resolvable:$true] %s23
      %s25 = sshll.u32 [#allocation2], 4
      %s26 = int_to_ptr.vmem [resolvable:$true] %s25
      %31 = dma.hbm_to_vmem [thread:$0]  %s24, 1024, %s26, [#allocation3], 128, 128, 8
    $region5: #{tpu_custom_call.1} parent=1 // pred_fallthru
      _
    // Predicated region
    $region6: #{tpu_custom_call.1} parent=1 // pred_check
      _
    $region7: #{tpu_custom_call.1} parent=1 // pred_check_branch
      %33 = sbr.rel (0) target = $region9
    $region8: #{tpu_custom_call.1} parent=1 // pred_region
      %35 = vsyncadd [#allocation6], 0
      %s36 = sshll.u32 %s1, 4
      %s37 = int_to_ptr.hbm [resolvable:$true] %s36
      %s38 = sshll.u32 [#allocation5], 4
      %s39 = int_to_ptr.vmem [resolvable:$true] %s38
      %44 = dma.hbm_to_vmem [thread:$0]  %s37, 2048, %s39, [#allocation6], 128, 128, 8
    $region9: #{tpu_custom_call.1} parent=1 // pred_fallthru
      _
    // Predicated region
    $region10: #{tpu_custom_call.1} parent=1 // pred_check
      _
    $region11: #{tpu_custom_call.1} parent=1 // pred_check_branch
      %46 = sbr.rel (0) target = $region13
    $region12: #{tpu_custom_call.1} parent=1 // pred_region
      %48 = vsyncadd [#allocation6], 0
      %s50 = sshll.u32 %s2, 4
      %s51 = int_to_ptr.hbm [resolvable:$true] %s50
      %s52 = sshll.u32 [#allocation7], 4
      %s53 = int_to_ptr.vmem [resolvable:$true] %s52
      %55 = dma.hbm_to_vmem [thread:$0]  %s51, 32, %s53, [#allocation6]
    $region13: #{tpu_custom_call.1} parent=1 // pred_fallthru
      _
    // Predicated region
    $region14: #{tpu_custom_call.1} parent=1 // pred_check
      _
    $region15: #{tpu_custom_call.1} parent=1 // pred_check_branch
      %57 = sbr.rel (0) target = $region17
    $region16: #{tpu_custom_call.1} parent=1 // pred_region
      %59 = vsyncadd [#allocation9], 0
      %s60 = sshll.u32 %s3, 4
      %s61 = int_to_ptr.hbm [resolvable:$true] %s60
      %s62 = sshll.u32 [#allocation8], 4
      %s63 = int_to_ptr.vmem [resolvable:$true] %s62
      %68 = dma.hbm_to_vmem [thread:$0]  %s61, 2048, %s63, [#allocation9], 64, 64, 4
    $region17: #{tpu_custom_call.1} parent=1 // pred_fallthru
      _
    // Predicated region
    $region18: #{tpu_custom_call.1} parent=1 // pred_check
      _
    $region19: #{tpu_custom_call.1} parent=1 // pred_check_branch
      %70 = sbr.rel (0) target = $region21
    $region20: #{tpu_custom_call.1} parent=1 // pred_region
      _
    $region21: #{tpu_custom_call.1} parent=1 // pred_fallthru
      _
    // Predicated region
    $region22: #{tpu_custom_call.1} parent=1 // pred_check
      _
    $region23: #{tpu_custom_call.1} parent=1 // pred_check_branch
      %72 = sbr.rel (0) target = $region25
    $region24: #{tpu_custom_call.1} parent=1 // pred_region
      %74 = vsyncadd [#allocation9], 0
      %s75 = sshll.u32 %s5, 4
      %s76 = int_to_ptr.hbm [resolvable:$true] %s75
      %s77 = sshll.u32 [#allocation10], 4
      %s78 = int_to_ptr.vmem [resolvable:$true] %s77
      %83 = dma.hbm_to_vmem [thread:$0]  %s76, 1024, %s78, [#allocation9], 64, 64, 4
    $region25: #{tpu_custom_call.1} parent=1 // pred_fallthru
      _
    // Predicated region
    $region26: #{tpu_custom_call.1} parent=1 // pred_check
      _
    $region27: #{tpu_custom_call.1} parent=1 // pred_check_branch
      %85 = sbr.rel (0) target = $region29
    $region28: #{tpu_custom_call.1} parent=1 // pred_region
      _
    $region29: #{tpu_custom_call.1} parent=1 // pred_fallthru
      _
    // Predicated region
    $region30: #{tpu_custom_call.1} parent=1 // pred_check
      _
    $region31: #{tpu_custom_call.1} parent=1 // pred_check_branch
      %87 = sbr.rel (0) target = $region33
    $region32: #{tpu_custom_call.1} parent=1 // pred_region
      %89 = vsyncadd [#allocation12], 0
      %s90 = sshll.u32 %s7, 4
      %s91 = int_to_ptr.hbm [resolvable:$true] %s90
      %s92 = sshll.u32 [#allocation11], 4
      %s93 = int_to_ptr.vmem [resolvable:$true] %s92
      %98 = dma.hbm_to_vmem [thread:$0]  %s91, 1024, %s93, [#allocation12], 64, 64, 4
    $region33: #{tpu_custom_call.1} parent=1 // pred_fallthru
      _
    // Predicated region
    $region34: #{tpu_custom_call.1} parent=1 // pred_check
      _
    $region35: #{tpu_custom_call.1} parent=1 // pred_check_branch
      %100 = sbr.rel (0) target = $region37
    $region36: #{tpu_custom_call.1} parent=1 // pred_region
      _
    $region37: #{tpu_custom_call.1} parent=1 // pred_fallthru
      _
    // Predicated region
    $region38: #{tpu_custom_call.1} parent=1 // pred_check
      _
    $region39: #{tpu_custom_call.1} parent=1 // pred_check_branch
      %102 = sbr.rel (0) target = $region41
    $region40: #{tpu_custom_call.1} parent=1 // pred_region
      %104 = dma.done [#allocation3], 1024
    $region41: #{tpu_custom_call.1} parent=1 // pred_fallthru
      _
    // Predicated region
    $region42: #{tpu_custom_call.1} parent=1 // pred_check
      _
    $region43: #{tpu_custom_call.1} parent=1 // pred_check_branch
      %106 = sbr.rel (0) target = $region45
    $region44: #{tpu_custom_call.1} parent=1 // pred_region
      %108 = dma.done [#allocation6], 2048
    $region45: #{tpu_custom_call.1} parent=1 // pred_fallthru
      _
    // Predicated region
    $region46: #{tpu_custom_call.1} parent=1 // pred_check
      _
    $region47: #{tpu_custom_call.1} parent=1 // pred_check_branch
      %110 = sbr.rel (0) target = $region49
    $region48: #{tpu_custom_call.1} parent=1 // pred_region
      %112 = dma.done [#allocation6], 32
    $region49: #{tpu_custom_call.1} parent=1 // pred_fallthru
      _
    // Predicated region
    $region50: #{tpu_custom_call.1} parent=1 // pred_check
      _
    $region51: #{tpu_custom_call.1} parent=1 // pred_check_branch
      %114 = sbr.rel (0) target = $region53
    $region52: #{tpu_custom_call.1} parent=1 // pred_region
      %116 = dma.done [#allocation9], 2048
    $region53: #{tpu_custom_call.1} parent=1 // pred_fallthru
      _
    // Predicated region
    $region54: #{tpu_custom_call.1} parent=1 // pred_check
      _
    $region55: #{tpu_custom_call.1} parent=1 // pred_check_branch
      %118 = sbr.rel (0) target = $region57
    $region56: #{tpu_custom_call.1} parent=1 // pred_region
      %120 = dma.done [#allocation9], 1024
    $region57: #{tpu_custom_call.1} parent=1 // pred_fallthru
      _
    // Predicated region
    $region58: #{tpu_custom_call.1} parent=1 // pred_check
      _
    $region59: #{tpu_custom_call.1} parent=1 // pred_check_branch
      %122 = sbr.rel (0) target = $region61
    $region60: #{tpu_custom_call.1} parent=1 // pred_region
      %124 = dma.done [#allocation12], 1024
    $region61: #{tpu_custom_call.1} parent=1 // pred_fallthru
      _
    %v125 = vld [vmem:[#allocation2] sm:$0xff]
    %v126 = vld [vmem:[#allocation2 + $0x8] sm:$0xff]
    %v127 = vld [vmem:[#allocation2 + $0x10] sm:$0xff]
    %v128 = vld [vmem:[#allocation2 + $0x18] sm:$0xff]
    %v129 = vld [vmem:[#allocation2 + $0x20] sm:$0xff]
    %v130 = vld [vmem:[#allocation2 + $0x28] sm:$0xff]
    %v131 = vld [vmem:[#allocation2 + $0x30] sm:$0xff]
    %v132 = vld [vmem:[#allocation2 + $0x38] sm:$0xff]
    %v133 = vpack.c.bf16 %v126, %v125
    %v134 = vpack.c.bf16 %v128, %v127
    %v135 = vpack.c.bf16 %v130, %v129
    %v136 = vpack.c.bf16 %v132, %v131
    %v137 = vld [vmem:[#allocation5] sm:$0xff]
    %v138 = vld [vmem:[#allocation5 + $0x8] sm:$0xff]
    %v139 = vld [vmem:[#allocation5 + $0x10] sm:$0xff]
    %v140 = vld [vmem:[#allocation5 + $0x18] sm:$0xff]
    %v141 = vld [vmem:[#allocation5 + $0x20] sm:$0xff]
    %v142 = vld [vmem:[#allocation5 + $0x28] sm:$0xff]
    %v143 = vld [vmem:[#allocation5 + $0x30] sm:$0xff]
    %v144 = vld [vmem:[#allocation5 + $0x38] sm:$0xff]
    %v145 = vld [vmem:[#allocation5 + $0x40] sm:$0xff]
    %v146 = vld [vmem:[#allocation5 + $0x48] sm:$0xff]
    %v147 = vld [vmem:[#allocation5 + $0x50] sm:$0xff]
    %v148 = vld [vmem:[#allocation5 + $0x58] sm:$0xff]
    %v149 = vld [vmem:[#allocation5 + $0x60] sm:$0xff]
    %v150 = vld [vmem:[#allocation5 + $0x68] sm:$0xff]
    %v151 = vld [vmem:[#allocation5 + $0x70] sm:$0xff]
    %v152 = vld [vmem:[#allocation5 + $0x78] sm:$0xff]
    %v153 = vld [vmem:[#allocation7] sm:$0x3]
    %v155 = vperm.slane %v153, 0
    %v156 = vperm.slane %v153, 1
    %v175 = vunpack.c.l.b16 %v137
    %v176 = vunpack.c.h.b16 %v137
    %v177 = vunpack.c.l.b16 %v138
    %v178 = vunpack.c.h.b16 %v138
    %v179 = vunpack.c.l.b16 %v139
    %v180 = vunpack.c.h.b16 %v139
    %v181 = vunpack.c.l.b16 %v140
    %v182 = vunpack.c.h.b16 %v140
    %v183 = vunpack.c.l.b16 %v141
    %v184 = vunpack.c.h.b16 %v141
    %v185 = vunpack.c.l.b16 %v142
    %v186 = vunpack.c.h.b16 %v142
    %v187 = vunpack.c.l.b16 %v143
    %v188 = vunpack.c.h.b16 %v143
    %v189 = vunpack.c.l.b16 %v144
    %v190 = vunpack.c.h.b16 %v144
    %v191 = vunpack.c.l.b16 %v145
    %v192 = vunpack.c.h.b16 %v145
    %v193 = vunpack.c.l.b16 %v146
    %v194 = vunpack.c.h.b16 %v146
    %v195 = vunpack.c.l.b16 %v147
    %v196 = vunpack.c.h.b16 %v147
    %v197 = vunpack.c.l.b16 %v148
    %v198 = vunpack.c.h.b16 %v148
    %v199 = vunpack.c.l.b16 %v149
    %v200 = vunpack.c.h.b16 %v149
    %v201 = vunpack.c.l.b16 %v150
    %v202 = vunpack.c.h.b16 %v150
    %v203 = vunpack.c.l.b16 %v151
    %v204 = vunpack.c.h.b16 %v151
    %v205 = vunpack.c.l.b16 %v152
    %v206 = vunpack.c.h.b16 %v152
    %v207 = vpack.c.b16 %v177, %v175
    %v208 = vpack.c.b16 %v178, %v176
    %v209 = vpack.c.b16 %v181, %v179
    %v210 = vpack.c.b16 %v182, %v180
    %v211 = vpack.c.b16 %v185, %v183
    %v212 = vpack.c.b16 %v186, %v184
    %v213 = vpack.c.b16 %v189, %v187
    %v214 = vpack.c.b16 %v190, %v188
    %v215 = vpack.c.b16 %v193, %v191
    %v216 = vpack.c.b16 %v194, %v192
    %v217 = vpack.c.b16 %v197, %v195
    %v218 = vpack.c.b16 %v198, %v196
    %v219 = vpack.c.b16 %v201, %v199
    %v220 = vpack.c.b16 %v202, %v200
    %v221 = vpack.c.b16 %v205, %v203
    %v222 = vpack.c.b16 %v206, %v204
    %239 = vmatpush.bf16.msra.mxu0 %v221
    %240 = vmatpush.bf16.msra.mxu0 %v219
    %241 = vmatpush.bf16.msra.mxu0 %v217
    %242 = vmatpush.bf16.msra.mxu0 %v215
    %243 = vmatpush.bf16.msra.mxu0 %v213
    %244 = vmatpush.bf16.msra.mxu0 %v211
    %245 = vmatpush.bf16.msra.mxu0 %v209
    %246 = vmatpush.bf16.msra.mxu0 %v207
    %247 = vmatmul.bf16.gmra.mxu0 %v133
    %v248 = vpop.f32.mrf.mxu0
    %v249 = vadd.f32 %v155, %v248
    %v250 = vpop.f32.mrf.mxu0
    %v251 = vadd.f32 %v155, %v250
    %252 = vmatmul.bf16.gmra.mxu0 %v134
    %v253 = vpop.f32.mrf.mxu0
    %v254 = vadd.f32 %v155, %v253
    %v255 = vpop.f32.mrf.mxu0
    %v256 = vadd.f32 %v155, %v255
    %257 = vmatmul.bf16.gmra.mxu0 %v135
    %v258 = vpop.f32.mrf.mxu0
    %v259 = vadd.f32 %v155, %v258
    %v260 = vpop.f32.mrf.mxu0
    %v261 = vadd.f32 %v155, %v260
    %262 = vmatmul.bf16.gmra.mxu0 %v136
    %v263 = vpop.f32.mrf.mxu0
    %v264 = vadd.f32 %v155, %v263
    %v265 = vpop.f32.mrf.mxu0
    %v266 = vadd.f32 %v155, %v265
    %267 = vdwg.mxu0
    %268 = vmatpush.bf16.msra.mxu0 %v222
    %269 = vmatpush.bf16.msra.mxu0 %v220
    %270 = vmatpush.bf16.msra.mxu0 %v218
    %271 = vmatpush.bf16.msra.mxu0 %v216
    %272 = vmatpush.bf16.msra.mxu0 %v214
    %273 = vmatpush.bf16.msra.mxu0 %v212
    %274 = vmatpush.bf16.msra.mxu0 %v210
    %275 = vmatpush.bf16.msra.mxu0 %v208
    %276 = vmatmul.bf16.gmra.mxu0 %v133
    %v277 = vpop.f32.mrf.mxu0
    %v278 = vadd.f32 %v156, %v277
    %v279 = vpop.f32.mrf.mxu0
    %v280 = vadd.f32 %v156, %v279
    %281 = vmatmul.bf16.gmra.mxu0 %v134
    %v282 = vpop.f32.mrf.mxu0
    %v283 = vadd.f32 %v156, %v282
    %v284 = vpop.f32.mrf.mxu0
    %v285 = vadd.f32 %v156, %v284
    %286 = vmatmul.bf16.gmra.mxu0 %v135
    %v287 = vpop.f32.mrf.mxu0
    %v288 = vadd.f32 %v156, %v287
    %v289 = vpop.f32.mrf.mxu0
    %v290 = vadd.f32 %v156, %v289
    %291 = vmatmul.bf16.gmra.mxu0 %v136
    %v292 = vpop.f32.mrf.mxu0
    %v293 = vadd.f32 %v156, %v292
    %v294 = vpop.f32.mrf.mxu0
    %v295 = vadd.f32 %v156, %v294
    %296 = vdwg.mxu0
    %v297 = vmax.f32 %v249, 0.0
    %v298 = vmax.f32 %v278, 0.0
    %v299 = vmax.f32 %v251, 0.0
    %v300 = vmax.f32 %v280, 0.0
    %v301 = vmax.f32 %v254, 0.0
    %v302 = vmax.f32 %v283, 0.0
    %v303 = vmax.f32 %v256, 0.0
    %v304 = vmax.f32 %v285, 0.0
    %v305 = vmax.f32 %v259, 0.0
    %v306 = vmax.f32 %v288, 0.0
    %v307 = vmax.f32 %v261, 0.0
    %v308 = vmax.f32 %v290, 0.0
    %v309 = vmax.f32 %v264, 0.0
    %v310 = vmax.f32 %v293, 0.0
    %v311 = vmax.f32 %v266, 0.0
    %v312 = vmax.f32 %v295, 0.0
    %v313 = vpack.c.bf16 %v299, %v297
    %v314 = vpack.c.bf16 %v300, %v298
    %v315 = vpack.c.bf16 %v303, %v301
    %v316 = vpack.c.bf16 %v304, %v302
    %v317 = vpack.c.bf16 %v307, %v305
    %v318 = vpack.c.bf16 %v308, %v306
    %v319 = vpack.c.bf16 %v311, %v309
    %v320 = vpack.c.bf16 %v312, %v310
    %v321 = vld [vmem:[#allocation8] sm:$0xf]
    %v322 = vld [vmem:[#allocation8 + $0x4] sm:$0xf]
    %v323 = vld [vmem:[#allocation8 + $0x8] sm:$0xf]
    %v324 = vld [vmem:[#allocation8 + $0xc] sm:$0xf]
    %v325 = vld [vmem:[#allocation8 + $0x10] sm:$0xf]
    %v326 = vld [vmem:[#allocation8 + $0x14] sm:$0xf]
    %v327 = vld [vmem:[#allocation8 + $0x18] sm:$0xf]
    %v328 = vld [vmem:[#allocation8 + $0x1c] sm:$0xf]
    %v329 = vld [vmem:[#allocation8 + $0x20] sm:$0xf]
    %v330 = vld [vmem:[#allocation8 + $0x24] sm:$0xf]
    %v331 = vld [vmem:[#allocation8 + $0x28] sm:$0xf]
    %v332 = vld [vmem:[#allocation8 + $0x2c] sm:$0xf]
    %v333 = vld [vmem:[#allocation8 + $0x30] sm:$0xf]
    %v334 = vld [vmem:[#allocation8 + $0x34] sm:$0xf]
    %v335 = vld [vmem:[#allocation8 + $0x38] sm:$0xf]
    %v336 = vld [vmem:[#allocation8 + $0x3c] sm:$0xf]
    %v337 = vld [vmem:[#allocation8 + $0x40] sm:$0xf]
    %v338 = vld [vmem:[#allocation8 + $0x44] sm:$0xf]
    %v339 = vld [vmem:[#allocation8 + $0x48] sm:$0xf]
    %v340 = vld [vmem:[#allocation8 + $0x4c] sm:$0xf]
    %v341 = vld [vmem:[#allocation8 + $0x50] sm:$0xf]
    %v342 = vld [vmem:[#allocation8 + $0x54] sm:$0xf]
    %v343 = vld [vmem:[#allocation8 + $0x58] sm:$0xf]
    %v344 = vld [vmem:[#allocation8 + $0x5c] sm:$0xf]
    %v345 = vld [vmem:[#allocation8 + $0x60] sm:$0xf]
    %v346 = vld [vmem:[#allocation8 + $0x64] sm:$0xf]
    %v347 = vld [vmem:[#allocation8 + $0x68] sm:$0xf]
    %v348 = vld [vmem:[#allocation8 + $0x6c] sm:$0xf]
    %v349 = vld [vmem:[#allocation8 + $0x70] sm:$0xf]
    %v350 = vld [vmem:[#allocation8 + $0x74] sm:$0xf]
    %v351 = vld [vmem:[#allocation8 + $0x78] sm:$0xf]
    %v352 = vld [vmem:[#allocation8 + $0x7c] sm:$0xf]
    %v353 = vld [vmem:[%s4] sm:$0x1]
    %v355 = vperm.slane %v353, 0
    %v389 = vunpack.c.l.b16 %v321
    %v390 = vunpack.c.l.b16 %v322
    %v391 = vunpack.c.l.b16 %v323
    %v392 = vunpack.c.l.b16 %v324
    %v393 = vunpack.c.l.b16 %v325
    %v394 = vunpack.c.l.b16 %v326
    %v395 = vunpack.c.l.b16 %v327
    %v396 = vunpack.c.l.b16 %v328
    %v397 = vunpack.c.l.b16 %v329
    %v398 = vunpack.c.l.b16 %v330
    %v399 = vunpack.c.l.b16 %v331
    %v400 = vunpack.c.l.b16 %v332
    %v401 = vunpack.c.l.b16 %v333
    %v402 = vunpack.c.l.b16 %v334
    %v403 = vunpack.c.l.b16 %v335
    %v404 = vunpack.c.l.b16 %v336
    %v405 = vunpack.c.l.b16 %v337
    %v406 = vunpack.c.l.b16 %v338
    %v407 = vunpack.c.l.b16 %v339
    %v408 = vunpack.c.l.b16 %v340
    %v409 = vunpack.c.l.b16 %v341
    %v410 = vunpack.c.l.b16 %v342
    %v411 = vunpack.c.l.b16 %v343
    %v412 = vunpack.c.l.b16 %v344
    %v413 = vunpack.c.l.b16 %v345
    %v414 = vunpack.c.l.b16 %v346
    %v415 = vunpack.c.l.b16 %v347
    %v416 = vunpack.c.l.b16 %v348
    %v417 = vunpack.c.l.b16 %v349
    %v418 = vunpack.c.l.b16 %v350
    %v419 = vunpack.c.l.b16 %v351
    %v420 = vunpack.c.l.b16 %v352
    %v421 = vpack.c.b16 %v390, %v389
    %v422 = vpack.c.b16 %v392, %v391
    %v423 = vpack.c.b16 %v394, %v393
    %v424 = vpack.c.b16 %v396, %v395
    %v425 = vpack.c.b16 %v398, %v397
    %v426 = vpack.c.b16 %v400, %v399
    %v427 = vpack.c.b16 %v402, %v401
    %v428 = vpack.c.b16 %v404, %v403
    %v429 = vpack.c.b16 %v406, %v405
    %v430 = vpack.c.b16 %v408, %v407
    %v431 = vpack.c.b16 %v410, %v409
    %v432 = vpack.c.b16 %v412, %v411
    %v433 = vpack.c.b16 %v414, %v413
    %v434 = vpack.c.b16 %v416, %v415
    %v435 = vpack.c.b16 %v418, %v417
    %v436 = vpack.c.b16 %v420, %v419
    %453 = vmatpush.bf16.msra.mxu0 %v428
    %454 = vmatpush.bf16.msra.mxu0 %v427
    %455 = vmatpush.bf16.msra.mxu0 %v426
    %456 = vmatpush.bf16.msra.mxu0 %v425
    %457 = vmatpush.bf16.msra.mxu0 %v424
    %458 = vmatpush.bf16.msra.mxu0 %v423
    %459 = vmatpush.bf16.msra.mxu0 %v422
    %460 = vmatpush.bf16.msra.mxu0 %v421
    %461 = vmatmul.bf16.gmra.mxu0 %v313
    %v462 = vpop.f32.mrf.mxu0
    %v463 = vadd.f32 %v355, %v462
    %v464 = vpop.f32.mrf.mxu0
    %v465 = vadd.f32 %v355, %v464
    %466 = vmatmul.bf16.gmra.mxu0 %v315
    %v467 = vpop.f32.mrf.mxu0
    %v468 = vadd.f32 %v355, %v467
    %v469 = vpop.f32.mrf.mxu0
    %v470 = vadd.f32 %v355, %v469
    %471 = vmatmul.bf16.gmra.mxu0 %v317
    %v472 = vpop.f32.mrf.mxu0
    %v473 = vadd.f32 %v355, %v472
    %v474 = vpop.f32.mrf.mxu0
    %v475 = vadd.f32 %v355, %v474
    %476 = vmatmul.bf16.gmra.mxu0 %v319
    %v477 = vpop.f32.mrf.mxu0
    %v478 = vadd.f32 %v355, %v477
    %v479 = vpop.f32.mrf.mxu0
    %v480 = vadd.f32 %v355, %v479
    %481 = vdwg.mxu0
    %482 = vmatpush.bf16.msra.mxu0 %v436
    %483 = vmatpush.bf16.msra.mxu0 %v435
    %484 = vmatpush.bf16.msra.mxu0 %v434
    %485 = vmatpush.bf16.msra.mxu0 %v433
    %486 = vmatpush.bf16.msra.mxu0 %v432
    %487 = vmatpush.bf16.msra.mxu0 %v431
    %488 = vmatpush.bf16.msra.mxu0 %v430
    %489 = vmatpush.bf16.msra.mxu0 %v429
    %490 = vmatmul.bf16.gmra.mxu0 %v314
    %v491 = vpop.f32.mrf.mxu0
    %v492 = vadd.f32 %v463, %v491
    %v493 = vpop.f32.mrf.mxu0
    %v494 = vadd.f32 %v465, %v493
    %495 = vmatmul.bf16.gmra.mxu0 %v316
    %v496 = vpop.f32.mrf.mxu0
    %v497 = vadd.f32 %v468, %v496
    %v498 = vpop.f32.mrf.mxu0
    %v499 = vadd.f32 %v470, %v498
    %500 = vmatmul.bf16.gmra.mxu0 %v318
    %v501 = vpop.f32.mrf.mxu0
    %v502 = vadd.f32 %v473, %v501
    %v503 = vpop.f32.mrf.mxu0
    %v504 = vadd.f32 %v475, %v503
    %505 = vmatmul.bf16.gmra.mxu0 %v320
    %v506 = vpop.f32.mrf.mxu0
    %v507 = vadd.f32 %v478, %v506
    %v508 = vpop.f32.mrf.mxu0
    %v509 = vadd.f32 %v480, %v508
    %510 = vdwg.mxu0
    %v511 = vmax.f32 %v492, 0.0
    %v512 = vmax.f32 %v494, 0.0
    %v513 = vmax.f32 %v497, 0.0
    %v514 = vmax.f32 %v499, 0.0
    %v515 = vmax.f32 %v502, 0.0
    %v516 = vmax.f32 %v504, 0.0
    %v517 = vmax.f32 %v507, 0.0
    %v518 = vmax.f32 %v509, 0.0
    %v519 = vpack.c.bf16 %v512, %v511
    %v520 = vpack.c.bf16 %v514, %v513
    %v521 = vpack.c.bf16 %v516, %v515
    %v522 = vpack.c.bf16 %v518, %v517
    %v523 = vld [vmem:[#allocation10] sm:$0xf]
    %v524 = vld [vmem:[#allocation10 + $0x4] sm:$0xf]
    %v525 = vld [vmem:[#allocation10 + $0x8] sm:$0xf]
    %v526 = vld [vmem:[#allocation10 + $0xc] sm:$0xf]
    %v527 = vld [vmem:[#allocation10 + $0x10] sm:$0xf]
    %v528 = vld [vmem:[#allocation10 + $0x14] sm:$0xf]
    %v529 = vld [vmem:[#allocation10 + $0x18] sm:$0xf]
    %v530 = vld [vmem:[#allocation10 + $0x1c] sm:$0xf]
    %v531 = vld [vmem:[#allocation10 + $0x20] sm:$0xf]
    %v532 = vld [vmem:[#allocation10 + $0x24] sm:$0xf]
    %v533 = vld [vmem:[#allocation10 + $0x28] sm:$0xf]
    %v534 = vld [vmem:[#allocation10 + $0x2c] sm:$0xf]
    %v535 = vld [vmem:[#allocation10 + $0x30] sm:$0xf]
    %v536 = vld [vmem:[#allocation10 + $0x34] sm:$0xf]
    %v537 = vld [vmem:[#allocation10 + $0x38] sm:$0xf]
    %v538 = vld [vmem:[#allocation10 + $0x3c] sm:$0xf]
    %v539 = vld [vmem:[%s6] sm:$0x1]
    %v541 = vperm.slane %v539, 0
    %v559 = vunpack.c.l.b16 %v523
    %v560 = vunpack.c.l.b16 %v524
    %v561 = vunpack.c.l.b16 %v525
    %v562 = vunpack.c.l.b16 %v526
    %v563 = vunpack.c.l.b16 %v527
    %v564 = vunpack.c.l.b16 %v528
    %v565 = vunpack.c.l.b16 %v529
    %v566 = vunpack.c.l.b16 %v530
    %v567 = vunpack.c.l.b16 %v531
    %v568 = vunpack.c.l.b16 %v532
    %v569 = vunpack.c.l.b16 %v533
    %v570 = vunpack.c.l.b16 %v534
    %v571 = vunpack.c.l.b16 %v535
    %v572 = vunpack.c.l.b16 %v536
    %v573 = vunpack.c.l.b16 %v537
    %v574 = vunpack.c.l.b16 %v538
    %v575 = vpack.c.b16 %v560, %v559
    %v576 = vpack.c.b16 %v562, %v561
    %v577 = vpack.c.b16 %v564, %v563
    %v578 = vpack.c.b16 %v566, %v565
    %v579 = vpack.c.b16 %v568, %v567
    %v580 = vpack.c.b16 %v570, %v569
    %v581 = vpack.c.b16 %v572, %v571
    %v582 = vpack.c.b16 %v574, %v573
    %591 = vmatpush.bf16.msra.mxu0 %v582
    %592 = vmatpush.bf16.msra.mxu0 %v581
    %593 = vmatpush.bf16.msra.mxu0 %v580
    %594 = vmatpush.bf16.msra.mxu0 %v579
    %595 = vmatpush.bf16.msra.mxu0 %v578
    %596 = vmatpush.bf16.msra.mxu0 %v577
    %597 = vmatpush.bf16.msra.mxu0 %v576
    %598 = vmatpush.bf16.msra.mxu0 %v575
    %599 = vmatmul.bf16.gmra.mxu0 %v519
    %v600 = vpop.f32.mrf.mxu0
    %v601 = vadd.f32 %v541, %v600
    %v602 = vpop.f32.mrf.mxu0
    %v603 = vadd.f32 %v541, %v602
    %604 = vmatmul.bf16.gmra.mxu0 %v520
    %v605 = vpop.f32.mrf.mxu0
    %v606 = vadd.f32 %v541, %v605
    %v607 = vpop.f32.mrf.mxu0
    %v608 = vadd.f32 %v541, %v607
    %609 = vmatmul.bf16.gmra.mxu0 %v521
    %v610 = vpop.f32.mrf.mxu0
    %v611 = vadd.f32 %v541, %v610
    %v612 = vpop.f32.mrf.mxu0
    %v613 = vadd.f32 %v541, %v612
    %614 = vmatmul.bf16.gmra.mxu0 %v522
    %v615 = vpop.f32.mrf.mxu0
    %v616 = vadd.f32 %v541, %v615
    %v617 = vpop.f32.mrf.mxu0
    %v618 = vadd.f32 %v541, %v617
    %619 = vdwg.mxu0
    %v620 = vmax.f32 %v601, 0.0
    %v621 = vmax.f32 %v603, 0.0
    %v622 = vmax.f32 %v606, 0.0
    %v623 = vmax.f32 %v608, 0.0
    %v624 = vmax.f32 %v611, 0.0
    %v625 = vmax.f32 %v613, 0.0
    %v626 = vmax.f32 %v616, 0.0
    %v627 = vmax.f32 %v618, 0.0
    %v628 = vpack.c.bf16 %v621, %v620
    %v629 = vpack.c.bf16 %v623, %v622
    %v630 = vpack.c.bf16 %v625, %v624
    %v631 = vpack.c.bf16 %v627, %v626
    %v632 = vld [vmem:[#allocation11] sm:$0xf]
    %v633 = vld [vmem:[#allocation11 + $0x4] sm:$0xf]
    %v634 = vld [vmem:[#allocation11 + $0x8] sm:$0xf]
    %v635 = vld [vmem:[#allocation11 + $0xc] sm:$0xf]
    %v636 = vld [vmem:[#allocation11 + $0x10] sm:$0xf]
    %v637 = vld [vmem:[#allocation11 + $0x14] sm:$0xf]
    %v638 = vld [vmem:[#allocation11 + $0x18] sm:$0xf]
    %v639 = vld [vmem:[#allocation11 + $0x1c] sm:$0xf]
    %v640 = vld [vmem:[#allocation11 + $0x20] sm:$0xf]
    %v641 = vld [vmem:[#allocation11 + $0x24] sm:$0xf]
    %v642 = vld [vmem:[#allocation11 + $0x28] sm:$0xf]
    %v643 = vld [vmem:[#allocation11 + $0x2c] sm:$0xf]
    %v644 = vld [vmem:[#allocation11 + $0x30] sm:$0xf]
    %v645 = vld [vmem:[#allocation11 + $0x34] sm:$0xf]
    %v646 = vld [vmem:[#allocation11 + $0x38] sm:$0xf]
    %v647 = vld [vmem:[#allocation11 + $0x3c] sm:$0xf]
    %v648 = vld [vmem:[%s8] sm:$0x1]
    %v650 = vperm.slane %v648, 0
    %v668 = vunpack.c.l.b16 %v632
    %v669 = vunpack.c.l.b16 %v633
    %v670 = vunpack.c.l.b16 %v634
    %v671 = vunpack.c.l.b16 %v635
    %v672 = vunpack.c.l.b16 %v636
    %v673 = vunpack.c.l.b16 %v637
    %v674 = vunpack.c.l.b16 %v638
    %v675 = vunpack.c.l.b16 %v639
    %v676 = vunpack.c.l.b16 %v640
    %v677 = vunpack.c.l.b16 %v641
    %v678 = vunpack.c.l.b16 %v642
    %v679 = vunpack.c.l.b16 %v643
    %v680 = vunpack.c.l.b16 %v644
    %v681 = vunpack.c.l.b16 %v645
    %v682 = vunpack.c.l.b16 %v646
    %v683 = vunpack.c.l.b16 %v647
    %v684 = vpack.c.b16 %v669, %v668
    %v685 = vpack.c.b16 %v671, %v670
    %v686 = vpack.c.b16 %v673, %v672
    %v687 = vpack.c.b16 %v675, %v674
    %v688 = vpack.c.b16 %v677, %v676
    %v689 = vpack.c.b16 %v679, %v678
    %v690 = vpack.c.b16 %v681, %v680
    %v691 = vpack.c.b16 %v683, %v682
    %700 = vmatpush.bf16.msra.mxu0 %v691
    %701 = vmatpush.bf16.msra.mxu0 %v690
    %702 = vmatpush.bf16.msra.mxu0 %v689
    %703 = vmatpush.bf16.msra.mxu0 %v688
    %704 = vmatpush.bf16.msra.mxu0 %v687
    %705 = vmatpush.bf16.msra.mxu0 %v686
    %706 = vmatpush.bf16.msra.mxu0 %v685
    %707 = vmatpush.bf16.msra.mxu0 %v684
    %708 = vmatmul.bf16.gmra.mxu0 %v628
    %v709 = vpop.f32.mrf.mxu0
    %v710 = vadd.f32 %v650, %v709
    %v711 = vpop.f32.mrf.mxu0
    %v712 = vadd.f32 %v650, %v711
    %713 = vmatmul.bf16.gmra.mxu0 %v629
    %v714 = vpop.f32.mrf.mxu0
    %v715 = vadd.f32 %v650, %v714
    %v716 = vpop.f32.mrf.mxu0
    %v717 = vadd.f32 %v650, %v716
    %718 = vmatmul.bf16.gmra.mxu0 %v630
    %v719 = vpop.f32.mrf.mxu0
    %v720 = vadd.f32 %v650, %v719
    %v721 = vpop.f32.mrf.mxu0
    %v722 = vadd.f32 %v650, %v721
    %723 = vmatmul.bf16.gmra.mxu0 %v631
    %v724 = vpop.f32.mrf.mxu0
    %v725 = vadd.f32 %v650, %v724
    %v726 = vpop.f32.mrf.mxu0
    %v727 = vadd.f32 %v650, %v726
    %728 = vdwg.mxu0
    %729 = vst [vmem:[#allocation13] sm:$0xff] %v710
    %730 = vst [vmem:[#allocation13 + $0x8] sm:$0xff] %v712
    %731 = vst [vmem:[#allocation13 + $0x10] sm:$0xff] %v715
    %732 = vst [vmem:[#allocation13 + $0x18] sm:$0xff] %v717
    %733 = vst [vmem:[#allocation13 + $0x20] sm:$0xff] %v720
    %734 = vst [vmem:[#allocation13 + $0x28] sm:$0xff] %v722
    %735 = vst [vmem:[#allocation13 + $0x30] sm:$0xff] %v725
    %736 = vst [vmem:[#allocation13 + $0x38] sm:$0xff] %v727
    // Predicated region
    $region62: #{tpu_custom_call.1} parent=1 // pred_check
      _
    $region63: #{tpu_custom_call.1} parent=1 // pred_check_branch
      %738 = sbr.rel (0) target = $region65
    $region64: #{tpu_custom_call.1} parent=1 // pred_region
      %740 = vsyncadd [#allocation4], 0
      %s741 = sshll.u32 [#allocation13], 4
      %s742 = int_to_ptr.vmem [resolvable:$true] %s741
      %s743 = sshll.u32 %s9, 4
      %s744 = int_to_ptr.hbm [resolvable:$true] %s743
      %749 = dma.vmem_to_hbm [thread:$0]  %s742, 1024, %s744, [#allocation4], 128, 128, 8
    $region65: #{tpu_custom_call.1} parent=1 // pred_fallthru
      _
    // Predicated region
    $region66: #{tpu_custom_call.1} parent=1 // pred_check
      _
    $region67: #{tpu_custom_call.1} parent=1 // pred_check_branch
      %751 = sbr.rel (0) target = $region69
    $region68: #{tpu_custom_call.1} parent=1 // pred_region
      %753 = dma.done [#allocation4], 1024
    $region69: #{tpu_custom_call.1} parent=1 // pred_fallthru
      _
    %754 = vsyncpa [#allocation3], 1
    %755 = vsyncpa [#allocation6], 1
    %756 = vsyncpa [#allocation9], 1
    %757 = vsyncpa [#allocation12], 1
    %758 = vsyncpa [#allocation4], 1

</llo_original>
